<compile_context>
chip_gen: v7x
topology: tpu7x:2x2x1
jax: 0.10.0
libtpu: 0.0.40
codegen_flags: <defaults>
</compile_context>

<pallas_src>
import jax
import jax.numpy as jnp
from jax import lax
from jax.experimental import pallas as pl
from jax.experimental.pallas import tpu as pltpu

KH, KW = 5, 5
C_IN, C_OUT = 1, 32


def _client_kernel(x_ref, w2_ref, sel_ref, b_ref, o_ref):
    """Fused conv5x5 + bias + ReLU + 2x2 maxpool for one batch block.

    x_ref:   (B_blk*H, W)        f32  B_blk images stacked along rows (Cin squeezed)
    w2_ref:  (KH, W, 2*F_pad)    f32  fused Toeplitz conv weights:
                                      lanes [0:F_pad) = even conv columns,
                                      lanes [F_pad:)  = odd conv columns
    sel_ref: (2, B_blk*Ho2, R)   f32  row-selection matrices (even / odd conv rows);
                                      also drop cross-sample boundary rows.
                                      R = B_blk*H - (KH-1)
    b_ref:   (1, F_pad)          f32  bias replicated per pooled column (zero padded)
    o_ref:   (B_blk*Ho2, F_pad)  f32  pooled output, lane-packed (m, c) -> m*32 + c
    """
    BH, W = x_ref.shape
    R = BH - (KH - 1)
    F2 = w2_ref.shape[-1]
    Fp = F2 // 2

    x = x_ref[...]                                           # (B_blk*H, W)

    # Conv as KH MXU matmuls (even+odd banks fused along lanes), f32 accumulate.
    # NOTE: default f32 matmul precision; test inputs are integer-valued so the
    # reference check is exact.  Request HIGHEST precision here if bit-closeness
    # to PyTorch f32 conv matters on real float data (MXU has ample slack).
    acc = jnp.dot(x[0:R, :], w2_ref[0], preferred_element_type=jnp.float32)
    for dy in range(1, KH):
        acc = acc + jnp.dot(x[dy:dy + R, :], w2_ref[dy],
                            preferred_element_type=jnp.float32)

    # 2x2 max-pool.
    #   Columns: even/odd conv-column banks sit in the two lane halves (F_pad is a
    #   multiple of 128, so this slice is vreg aligned) -> elementwise max.
    #   Rows: selection matmuls pick conv rows 2j / 2j+1 of each sample (and drop
    #   the invalid cross-sample boundary rows) -> elementwise max.
    #   Bias is per-channel and ReLU is monotone, so both commute with the max.
    cmax = jnp.maximum(acc[:, :Fp], acc[:, Fp:])             # (R, F_pad)
    rmax = jnp.maximum(
        jnp.dot(sel_ref[0], cmax, preferred_element_type=jnp.float32),
        jnp.dot(sel_ref[1], cmax, preferred_element_type=jnp.float32))  # (B_blk*Ho2, F_pad)

    # Bias + ReLU.  Dropout(0.25) in eval mode == identity.
    # TODO(synk): training-mode dropout (random mask + 1/(1-p) scaling) not emitted.
    o_ref[...] = jnp.maximum(rmax + b_ref[...], 0.0)


def _build_tables(w_torch, b_torch, H, W, b_blk):
    """Wrapper-side (plain JAX) weight preprocessing: fused even/odd Toeplitz conv
    table, row-selection matrices, lane-packed + lane-padded bias.  Hoist this out
    of the hot path when weights are static (inference)."""
    Ho, Wo = H - KH + 1, W - KW + 1
    Ho2, Wo2 = Ho // 2, Wo // 2
    F = Wo2 * C_OUT
    F_pad = ((F + 127) // 128) * 128              # lane-align -> unmasked stores

    # (C_OUT, 1, KH, KW) -> (KH, KW, C_OUT)
    w_k = jnp.transpose(w_torch.astype(jnp.float32), (2, 3, 1, 0)).reshape(KH, KW, C_OUT)

    p = jnp.arange(W)[:, None]                    # (W, 1)   input column
    m = jnp.arange(Wo2)[None, :]                  # (1, Wo2) pooled output column

    def toeplitz(parity):
        dx = p - (2 * m + parity)                 # (W, Wo2)
        valid = (dx >= 0) & (dx < KW)
        g = w_k[:, jnp.clip(dx, 0, KW - 1), :]    # (KH, W, Wo2, C_OUT)
        g = g * valid[None, :, :, None]
        g = g.reshape(KH, W, F)
        return jnp.pad(g, ((0, 0), (0, 0), (0, F_pad - F)))

    # Fused bank: even conv columns in lanes [0:F_pad), odd in [F_pad:2*F_pad).
    w2 = jnp.concatenate([toeplitz(0), toeplitz(1)], axis=-1)   # (KH, W, 2*F_pad)

    # Row selection over the stacked block: output row b*Ho2 + j picks conv rows
    # b*H + 2j (+1); cross-sample boundary rows are never selected.
    R = b_blk * H - (KH - 1)
    bj = jnp.arange(b_blk * Ho2)
    base = (bj // Ho2) * H + 2 * (bj % Ho2)
    r = jnp.arange(R)[None, :]
    sel = jnp.stack([(r == (base + 0)[:, None]).astype(jnp.float32),
                     (r == (base + 1)[:, None]).astype(jnp.float32)])  # (2, b_blk*Ho2, R)

    b_packed = jnp.pad(jnp.tile(b_torch.astype(jnp.float32), Wo2), (0, F_pad - F))
    return w2, sel, b_packed.reshape(1, F_pad), F, F_pad


def client_model_forward(x_nchw, w_torch, b_torch, *, b_blk=None, packed_output=False):
    """x_nchw: (N, 1, H, W) f32 -> (N, 32, (H-4)//2, (W-4)//2) f32 (NCHW),
    or the lane-packed (N, Ho2, Wo2*32) layout if packed_output=True."""
    N, Cin, H, W = x_nchw.shape
    assert Cin == C_IN
    Ho, Wo = H - KH + 1, W - KW + 1
    Ho2, Wo2 = Ho // 2, Wo // 2                   # PyTorch floor behavior for odd Ho/Wo

    if b_blk is None:
        # Aim for a few hundred MXU rows per step (align b_blk*Ho to 128 on v5e,
        # 256 on v6e/v7x for real workloads); never exceed the batch.
        b_blk = max(1, min(N, -(-256 // max(Ho, 1))))
    n_pad = -(-N // b_blk) * b_blk
    nb = n_pad // b_blk

    w2, sel, b_packed, F, F_pad = _build_tables(w_torch, b_torch, H, W, b_blk)

    x = jnp.squeeze(x_nchw.astype(jnp.float32), axis=1)       # (N, H, W), Cin squeezed
    if n_pad != N:
        x = jnp.pad(x, ((0, n_pad - N), (0, 0), (0, 0)))
    # Stack b_blk samples along rows: matmul M dim becomes b_blk*H; contiguous, free.
    x = x.reshape(nb, b_blk * H, W)

    M2 = b_blk * Ho2
    R = b_blk * H - (KH - 1)

    out_packed = pl.pallas_call(
        _client_kernel,
        out_shape=jax.ShapeDtypeStruct((nb, M2, F_pad), jnp.float32),
        grid=(nb,),
        in_specs=[
            pl.BlockSpec((None, b_blk * H, W), lambda n: (n, 0, 0)),   # per-step batch block
            # Invariant operands: constant index_map -> fetched once, stay resident.
            pl.BlockSpec((KH, W, 2 * F_pad), lambda n: (0, 0, 0)),
            pl.BlockSpec((2, M2, R), lambda n: (0, 0, 0)),
            pl.BlockSpec((1, F_pad), lambda n: (0, 0)),
        ],
        out_specs=pl.BlockSpec((None, M2, F_pad), lambda n: (n, 0, 0)),
        compiler_params=pltpu.CompilerParams(
            dimension_semantics=("parallel",),     # batch grid axis splits across v7x TCs
            vmem_limit_bytes=32 * 1024 * 1024,     # safe on all gens; raise on v5e/v6e if
                                                   # b_blk is pushed large (keep <=~24 MiB/step on v7x)
        ),
    )(x, w2, sel, b_packed)

    # (nb, b_blk*Ho2, F_pad) -> (N, Ho2, F): strip batch + lane padding.
    out = out_packed.reshape(n_pad, Ho2, F_pad)[:N, :, :F]
    if packed_output:
        return out                                             # (N, Ho2, Wo2*32), lane-packed
    return jnp.transpose(out.reshape(N, Ho2, Wo2, C_OUT), (0, 3, 1, 2))


def _reference_forward(x_nchw, w_torch, b_torch):
    """Independent pure-JAX reference (same semantics as the PyTorch module, eval mode)."""
    conv = lax.conv_general_dilated(
        x_nchw.astype(jnp.float32), w_torch.astype(jnp.float32),
        window_strides=(1, 1), padding="VALID",
        dimension_numbers=("NCHW", "OIHW", "NCHW"),
        precision=lax.Precision.HIGHEST)
    conv = jnp.maximum(conv + b_torch.reshape(1, C_OUT, 1, 1), 0.0)
    N, C, Ho, Wo = conv.shape
    return conv.reshape(N, C, Ho // 2, 2, Wo // 2, 2).max(axis=(3, 5))


if __name__ == "__main__":
    key = jax.random.PRNGKey(0)
    kx, kw, kb = jax.random.split(key, 3)

    # Small deterministic shapes: batch=8, 1 input channel, 16x16 spatial.
    # Values rounded to small integers so the conv is exact under any MXU
    # precision mode -> tight reference check.
    N, H, W = 8, 16, 16
    x = jnp.round(jax.random.normal(kx, (N, C_IN, H, W), dtype=jnp.float32) * 2.0)
    w = jnp.round(jax.random.normal(kw, (C_OUT, C_IN, KH, KW), dtype=jnp.float32))
    b = jnp.round(jax.random.normal(kb, (C_OUT,), dtype=jnp.float32) * 2.0)

    # b_blk=4 -> grid=(2,): batch-folded steps and an even-length grid for megacore.
    out = jax.block_until_ready(client_model_forward(x, w, b, b_blk=4))
    ref = jax.block_until_ready(_reference_forward(x, w, b))

    assert out.shape == (N, C_OUT, 6, 6), out.shape
    assert jnp.allclose(out, ref, atol=1e-4, rtol=1e-4), \
        float(jnp.max(jnp.abs(out - ref)))

    print("KERNEL_OK")
</pallas_src>

<mosaic_0001>
module attributes {stable_mosaic.version = 11 : i64} {
  func.func @_client_kernel(%arg0: i32, %arg1: memref<1x64x16xf32, #tpu.memory_space<vmem>>, %arg2: memref<5x16x512xf32, #tpu.memory_space<vmem>>, %arg3: memref<2x24x60xf32, #tpu.memory_space<vmem>>, %arg4: memref<1x256xf32, #tpu.memory_space<vmem>>, %arg5: memref<1x24x256xf32, #tpu.memory_space<vmem>>) attributes {dimension_semantics = [#tpu.dimension_semantics<parallel>], iteration_bounds = array<i64: 2>, scalar_prefetch = 0 : i64, scratch_operands = 0 : i64, tpu.core_type = #tpu.core_type<tc>, window_params = [{transform_indices = @transform_0, window_bounds = array<i64: 1, 64, 16>}, {pipeline_mode = #tpu.pipeline_mode<synchronous>, transform_indices = @transform_1, window_bounds = array<i64: 5, 16, 512>}, {pipeline_mode = #tpu.pipeline_mode<synchronous>, transform_indices = @transform_2, window_bounds = array<i64: 2, 24, 60>}, {pipeline_mode = #tpu.pipeline_mode<synchronous>, transform_indices = @transform_3, window_bounds = array<i64: 1, 256>}, {transform_indices = @transform_4, window_bounds = array<i64: 1, 24, 256>}]} {
    %c0 = arith.constant 0 : index
    %c0_0 = arith.constant 0 : index
    %c0_1 = arith.constant 0 : index
    %0 = vector.load %arg1[%c0, %c0_0, %c0_1] : memref<1x64x16xf32, #tpu.memory_space<vmem>>, vector<1x64x16xf32>
    %1 = vector.shape_cast %0 : vector<1x64x16xf32> to vector<64x16xf32>
    %2 = vector.extract_strided_slice %1 {offsets = [0, 0], sizes = [60, 16], strides = [1, 1]} : vector<64x16xf32> to vector<60x16xf32>
    %c0_2 = arith.constant 0 : index
    %c0_3 = arith.constant 0 : index
    %c0_4 = arith.constant 0 : index
    %3 = vector.load %arg2[%c0_2, %c0_3, %c0_4] : memref<5x16x512xf32, #tpu.memory_space<vmem>>, vector<1x16x512xf32>
    %4 = vector.shape_cast %3 : vector<1x16x512xf32> to vector<16x512xf32>
    %cst = arith.constant dense<0.000000e+00> : vector<60x512xf32>
    %5 = tpu.matmul %2, %4, %cst {dimension_numbers = #tpu.dot_dimension_numbers<[1], [0], [0], [1], [0, 0, 1, 1], [], []>} : vector<60x16xf32>, vector<16x512xf32>, vector<60x512xf32> -> vector<60x512xf32>
    %6 = vector.extract_strided_slice %1 {offsets = [1, 0], sizes = [60, 16], strides = [1, 1]} : vector<64x16xf32> to vector<60x16xf32>
    %c1 = arith.constant 1 : index
    %c0_5 = arith.constant 0 : index
    %c0_6 = arith.constant 0 : index
    %7 = vector.load %arg2[%c1, %c0_5, %c0_6] : memref<5x16x512xf32, #tpu.memory_space<vmem>>, vector<1x16x512xf32>
    %8 = vector.shape_cast %7 : vector<1x16x512xf32> to vector<16x512xf32>
    %cst_7 = arith.constant dense<0.000000e+00> : vector<60x512xf32>
    %9 = tpu.matmul %6, %8, %cst_7 {dimension_numbers = #tpu.dot_dimension_numbers<[1], [0], [0], [1], [0, 0, 1, 1], [], []>} : vector<60x16xf32>, vector<16x512xf32>, vector<60x512xf32> -> vector<60x512xf32>
    %10 = arith.addf %5, %9 : vector<60x512xf32>
    %11 = vector.extract_strided_slice %1 {offsets = [2, 0], sizes = [60, 16], strides = [1, 1]} : vector<64x16xf32> to vector<60x16xf32>
    %c2 = arith.constant 2 : index
    %c0_8 = arith.constant 0 : index
    %c0_9 = arith.constant 0 : index
    %12 = vector.load %arg2[%c2, %c0_8, %c0_9] : memref<5x16x512xf32, #tpu.memory_space<vmem>>, vector<1x16x512xf32>
    %13 = vector.shape_cast %12 : vector<1x16x512xf32> to vector<16x512xf32>
    %cst_10 = arith.constant dense<0.000000e+00> : vector<60x512xf32>
    %14 = tpu.matmul %11, %13, %cst_10 {dimension_numbers = #tpu.dot_dimension_numbers<[1], [0], [0], [1], [0, 0, 1, 1], [], []>} : vector<60x16xf32>, vector<16x512xf32>, vector<60x512xf32> -> vector<60x512xf32>
    %15 = arith.addf %10, %14 : vector<60x512xf32>
    %16 = vector.extract_strided_slice %1 {offsets = [3, 0], sizes = [60, 16], strides = [1, 1]} : vector<64x16xf32> to vector<60x16xf32>
    %c3 = arith.constant 3 : index
    %c0_11 = arith.constant 0 : index
    %c0_12 = arith.constant 0 : index
    %17 = vector.load %arg2[%c3, %c0_11, %c0_12] : memref<5x16x512xf32, #tpu.memory_space<vmem>>, vector<1x16x512xf32>
    %18 = vector.shape_cast %17 : vector<1x16x512xf32> to vector<16x512xf32>
    %cst_13 = arith.constant dense<0.000000e+00> : vector<60x512xf32>
    %19 = tpu.matmul %16, %18, %cst_13 {dimension_numbers = #tpu.dot_dimension_numbers<[1], [0], [0], [1], [0, 0, 1, 1], [], []>} : vector<60x16xf32>, vector<16x512xf32>, vector<60x512xf32> -> vector<60x512xf32>
    %20 = arith.addf %15, %19 : vector<60x512xf32>
    %21 = vector.extract_strided_slice %1 {offsets = [4, 0], sizes = [60, 16], strides = [1, 1]} : vector<64x16xf32> to vector<60x16xf32>
    %c4 = arith.constant 4 : index
    %c0_14 = arith.constant 0 : index
    %c0_15 = arith.constant 0 : index
    %22 = vector.load %arg2[%c4, %c0_14, %c0_15] : memref<5x16x512xf32, #tpu.memory_space<vmem>>, vector<1x16x512xf32>
    %23 = vector.shape_cast %22 : vector<1x16x512xf32> to vector<16x512xf32>
    %cst_16 = arith.constant dense<0.000000e+00> : vector<60x512xf32>
    %24 = tpu.matmul %21, %23, %cst_16 {dimension_numbers = #tpu.dot_dimension_numbers<[1], [0], [0], [1], [0, 0, 1, 1], [], []>} : vector<60x16xf32>, vector<16x512xf32>, vector<60x512xf32> -> vector<60x512xf32>
    %25 = arith.addf %20, %24 : vector<60x512xf32>
    %26 = vector.extract_strided_slice %25 {offsets = [0, 0], sizes = [60, 256], strides = [1, 1]} : vector<60x512xf32> to vector<60x256xf32>
    %27 = vector.extract_strided_slice %25 {offsets = [0, 256], sizes = [60, 256], strides = [1, 1]} : vector<60x512xf32> to vector<60x256xf32>
    %28 = arith.maximumf %26, %27 : vector<60x256xf32>
    %c0_17 = arith.constant 0 : index
    %c0_18 = arith.constant 0 : index
    %c0_19 = arith.constant 0 : index
    %29 = vector.load %arg3[%c0_17, %c0_18, %c0_19] : memref<2x24x60xf32, #tpu.memory_space<vmem>>, vector<1x24x60xf32>
    %30 = vector.shape_cast %29 : vector<1x24x60xf32> to vector<24x60xf32>
    %cst_20 = arith.constant dense<0.000000e+00> : vector<24x256xf32>
    %31 = tpu.matmul %30, %28, %cst_20 {dimension_numbers = #tpu.dot_dimension_numbers<[1], [0], [0], [1], [0, 0, 1, 1], [], []>} : vector<24x60xf32>, vector<60x256xf32>, vector<24x256xf32> -> vector<24x256xf32>
    %c1_21 = arith.constant 1 : index
    %c0_22 = arith.constant 0 : index
    %c0_23 = arith.constant 0 : index
    %32 = vector.load %arg3[%c1_21, %c0_22, %c0_23] : memref<2x24x60xf32, #tpu.memory_space<vmem>>, vector<1x24x60xf32>
    %33 = vector.shape_cast %32 : vector<1x24x60xf32> to vector<24x60xf32>
    %cst_24 = arith.constant dense<0.000000e+00> : vector<24x256xf32>
    %34 = tpu.matmul %33, %28, %cst_24 {dimension_numbers = #tpu.dot_dimension_numbers<[1], [0], [0], [1], [0, 0, 1, 1], [], []>} : vector<24x60xf32>, vector<60x256xf32>, vector<24x256xf32> -> vector<24x256xf32>
    %35 = arith.maximumf %31, %34 : vector<24x256xf32>
    %c0_25 = arith.constant 0 : index
    %c0_26 = arith.constant 0 : index
    %36 = vector.load %arg4[%c0_25, %c0_26] : memref<1x256xf32, #tpu.memory_space<vmem>>, vector<1x256xf32>
    %37 = vector.broadcast %36 : vector<1x256xf32> to vector<24x256xf32>
    %38 = arith.addf %35, %37 : vector<24x256xf32>
    %cst_27 = arith.constant 0.000000e+00 : f32
    %39 = vector.broadcast %cst_27 : f32 to vector<24x256xf32>
    %40 = arith.maximumf %38, %39 : vector<24x256xf32>
    %c0_28 = arith.constant 0 : index
    %c0_29 = arith.constant 0 : index
    %c0_30 = arith.constant 0 : index
    %41 = vector.load %arg5[%c0_28, %c0_29, %c0_30] : memref<1x24x256xf32, #tpu.memory_space<vmem>>, vector<1x24x256xf32>
    %42 = vector.shape_cast %41 : vector<1x24x256xf32> to vector<24x256xf32>
    %43 = vector.shape_cast %40 : vector<24x256xf32> to vector<1x24x256xf32>
    tpu.vector_store %arg5[%c0_28, %c0_29, %c0_30], %43 {strides = array<i32>} : memref<1x24x256xf32, #tpu.memory_space<vmem>>, vector<1x24x256xf32>,
    return
  }
  func.func @transform_0(%arg0: i32) -> (i32, i32, i32) {
    %c0_i32 = arith.constant 0 : i32
    %c0_i32_0 = arith.constant 0 : i32
    %c0_i32_1 = arith.constant 0 : i32
    return %arg0, %c0_i32, %c0_i32_0 : i32, i32, i32
  }
  func.func @transform_1(%arg0: i32) -> (i32, i32, i32) {
    %c0_i32 = arith.constant 0 : i32
    %c0_i32_0 = arith.constant 0 : i32
    %c0_i32_1 = arith.constant 0 : i32
    %c0_i32_2 = arith.constant 0 : i32
    return %c0_i32, %c0_i32_0, %c0_i32_1 : i32, i32, i32
  }
  func.func @transform_2(%arg0: i32) -> (i32, i32, i32) {
    %c0_i32 = arith.constant 0 : i32
    %c0_i32_0 = arith.constant 0 : i32
    %c0_i32_1 = arith.constant 0 : i32
    %c0_i32_2 = arith.constant 0 : i32
    return %c0_i32, %c0_i32_0, %c0_i32_1 : i32, i32, i32
  }
  func.func @transform_3(%arg0: i32) -> (i32, i32) {
    %c0_i32 = arith.constant 0 : i32
    %c0_i32_0 = arith.constant 0 : i32
    %c0_i32_1 = arith.constant 0 : i32
    return %c0_i32, %c0_i32_0 : i32, i32
  }
  func.func @transform_4(%arg0: i32) -> (i32, i32, i32) {
    %c0_i32 = arith.constant 0 : i32
    %c0_i32_0 = arith.constant 0 : i32
    %c0_i32_1 = arith.constant 0 : i32
    return %arg0, %c0_i32, %c0_i32_0 : i32, i32, i32
  }
}

</mosaic_0001>

<llo_original>
// kernel: tpu_custom_call.1
$region0: #{tpu_custom_call.1}
  #allocation0 [shape = 'u32[]', space=smem, size = 0x4, offset = 0x4, fixed_abs, tag = 'smem constant byte address 0x4 - core index']
  #allocation1 [shape = 'u32[144,128]{1,0:T(1,128)}', space=vmem, size = 0x12000, scoped, tag = 'internal scratch']
  %s0 = inlined_call_operand.vmem [shape: f32[2,64,16], index: 0, kind: input, shape index: {}]
  %s1 = inlined_call_operand.hbm [shape: f32[5,16,512], index: 1, kind: input, shape index: {}]
  %s2 = inlined_call_operand.vmem [shape: f32[2,24,60], index: 2, kind: input, shape index: {}]
  %s3 = inlined_call_operand.vmem [shape: f32[1,256], index: 3, kind: input, shape index: {}]
  %s4 = inlined_call_operand.hbm [shape: f32[2,24,256], index: 4, kind: output, shape index: {}]
  %s5 = sld [smem:[#allocation0]]
  $region53: #{tpu_custom_call.1} parent=0
    _
  %s7 = ssub.s32 1, %s5
  %s8 = scalar_select 0, %s7, %s5
  $region1: #{tpu_custom_call.1} parent=0
    #allocation2 [shape = 'u8[163840]{0}', space=vmem, size = 0x28000, scoped, tag = 'input window, operand 1, single buffered']
    #allocation3 [shape = 's32[2]{0}', space=sflag, size = 0x8, scoped, tag = 'scoped memory for tpu_custom_call.1']
    #allocation4 [shape = 's32[2]{0}', space=sflag, size = 0x8, scoped, tag = 'scoped memory for tpu_custom_call.1']
    #allocation5 [shape = 'u8[49152]{0}', space=vmem, size = 0xc000, scoped, tag = 'output window, operand 0']
    %9 = vsyncpa [#allocation3], 0
    %10 = vsyncpa [#allocation4], 0
    %s11 = scalar_lea.sflag [#allocation4], 1
    %12 = vsyncpa %s11, 0
    loop: start=0, step=1, limit=4
    $region2: #{tpu_custom_call.1} parent=1 // loop_pre_header
      _
    $region3: #{tpu_custom_call.1} parent=1 // loop_header
      %s14 = sphi 0, %s18
      %p15 = scmp.ge.s32.totalorder %s14, 4
      %s24 = sphi 0, %s26
      %s27 = sphi 0, %s24
      %s28 = sphi 0, %s27
      %s44 = sphi 0, %s28
      %s48 = sphi 0, %s48
      %s50 = sphi 0, %s48
      %s51 = sphi 0, %s50
      %s65 = sphi 0, %s51
      %s69 = sphi 0, %s69
      %s71 = sphi 0, %s69
      %s72 = sphi 0, %s71
      %s86 = sphi 0, %s72
      %s90 = sphi 0, %s90
      %s92 = sphi 0, %s90
      %s93 = sphi 0, %s92
      %s107 = sphi 0, %s93
      %s113 = sphi 0, %s115
      %s116 = sphi 0, %s113
      %s117 = sphi 0, %s116
      %s133 = sphi 0, %s117
    $region4: #{tpu_custom_call.1} parent=1 // loop_header_branch
      %17 = sbr.rel (%p15) target = $region8
    $region5: #{tpu_custom_call.1} parent=1 // loop_body
      %s19 = ssub.s32 %s14, 1
      %s20 = ssub.s32 %s14, 2
      %s21 = sadd.s32 %s14, 1
      %s22 = ssub.s32 %s14, %s21
      %p23 = scmp.eq.s32.totalorder %s22, 0
      %s25 = sadd.s32 %s24, 1
      %s26 = scalar_select %p23, %s24, %s25
      %p29 = pneg %p23
      %p30 = scmp.eq.s32.totalorder %s14, 1
      %p31 = por %p29, %p30
      %p32 = scmp.ne.s32.totalorder %s24, %s27
      %p33 = scmp.eq.s32.totalorder %s14, 0
      %p34 = por %p32, %p33
      %p35 = scmp.ne.s32.totalorder %s24, %s27
      %p36 = scmp.eq.s32.totalorder %s19, 1
      %p37 = por %p35, %p36
      %p38 = scmp.ne.s32.totalorder %s27, %s28
      %p39 = scmp.eq.s32.totalorder %s19, 0
      %p40 = por %p38, %p39
      %p41 = scmp.ne.s32.totalorder %s27, %s28
      %p42 = scmp.eq.s32.totalorder %s20, 1
      %p43 = por %p41, %p42
      %p45 = scmp.ne.s32.totalorder %s28, %s44
      %p46 = scmp.eq.s32.totalorder %s20, 0
      %p47 = por %p45, %p46
      %s49 = sadd.s32 %s48, 1
      %p52 = scmp.eq.s32.totalorder %s14, 1
      %p53 = scmp.ne.s32.totalorder %s48, %s50
      %p54 = scmp.eq.s32.totalorder %s14, 0
      %p55 = por %p53, %p54
      %p56 = scmp.ne.s32.totalorder %s48, %s50
      %p57 = scmp.eq.s32.totalorder %s19, 1
      %p58 = por %p56, %p57
      %p59 = scmp.ne.s32.totalorder %s50, %s51
      %p60 = scmp.eq.s32.totalorder %s19, 0
      %p61 = por %p59, %p60
      %p62 = scmp.ne.s32.totalorder %s50, %s51
      %p63 = scmp.eq.s32.totalorder %s20, 1
      %p64 = por %p62, %p63
      %p66 = scmp.ne.s32.totalorder %s51, %s65
      %p67 = scmp.eq.s32.totalorder %s20, 0
      %p68 = por %p66, %p67
      %s70 = sadd.s32 %s69, 1
      %p73 = scmp.eq.s32.totalorder %s14, 1
      %p74 = scmp.ne.s32.totalorder %s69, %s71
      %p75 = scmp.eq.s32.totalorder %s14, 0
      %p76 = por %p74, %p75
      %p77 = scmp.ne.s32.totalorder %s69, %s71
      %p78 = scmp.eq.s32.totalorder %s19, 1
      %p79 = por %p77, %p78
      %p80 = scmp.ne.s32.totalorder %s71, %s72
      %p81 = scmp.eq.s32.totalorder %s19, 0
      %p82 = por %p80, %p81
      %p83 = scmp.ne.s32.totalorder %s71, %s72
      %p84 = scmp.eq.s32.totalorder %s20, 1
      %p85 = por %p83, %p84
      %p87 = scmp.ne.s32.totalorder %s72, %s86
      %p88 = scmp.eq.s32.totalorder %s20, 0
      %p89 = por %p87, %p88
      %s91 = sadd.s32 %s90, 1
      %p94 = scmp.eq.s32.totalorder %s14, 1
      %p95 = scmp.ne.s32.totalorder %s90, %s92
      %p96 = scmp.eq.s32.totalorder %s14, 0
      %p97 = por %p95, %p96
      %p98 = scmp.ne.s32.totalorder %s90, %s92
      %p99 = scmp.eq.s32.totalorder %s19, 1
      %p100 = por %p98, %p99
      %p101 = scmp.ne.s32.totalorder %s92, %s93
      %p102 = scmp.eq.s32.totalorder %s19, 0
      %p103 = por %p101, %p102
      %p104 = scmp.ne.s32.totalorder %s92, %s93
      %p105 = scmp.eq.s32.totalorder %s20, 1
      %p106 = por %p104, %p105
      %p108 = scmp.ne.s32.totalorder %s93, %s107
      %p109 = scmp.eq.s32.totalorder %s20, 0
      %p110 = por %p108, %p109
      %s111 = ssub.s32 %s14, %s21
      %p112 = scmp.eq.s32.totalorder %s111, 0
      %s114 = sadd.s32 %s113, 1
      %s115 = scalar_select %p112, %s113, %s114
      %p118 = pneg %p112
      %p119 = scmp.eq.s32.totalorder %s14, 1
      %p120 = por %p118, %p119
      %p121 = scmp.ne.s32.totalorder %s113, %s116
      %p122 = scmp.eq.s32.totalorder %s14, 0
      %p123 = por %p121, %p122
      %p124 = scmp.ne.s32.totalorder %s113, %s116
      %p125 = scmp.eq.s32.totalorder %s19, 1
      %p126 = por %p124, %p125
      %p127 = scmp.ne.s32.totalorder %s116, %s117
      %p128 = scmp.eq.s32.totalorder %s19, 0
      %p129 = por %p127, %p128
      %p130 = scmp.ne.s32.totalorder %s116, %s117
      %p131 = scmp.eq.s32.totalorder %s20, 1
      %p132 = por %p130, %p131
      %p134 = scmp.ne.s32.totalorder %s117, %s133
      %p135 = scmp.eq.s32.totalorder %s20, 0
      %p136 = por %p134, %p135
      %p137 = scmp.le.s32.totalorder 1, %s14
      %p138 = scmp.lt.s32.totalorder %s14, 3
      %p139 = pnand %p137, %p138
      %p140 = pneg %p139
      // Predicated region
      $region9: #{tpu_custom_call.1} parent=5 // pred_check
        _
      $region10: #{tpu_custom_call.1} parent=5 // pred_check_branch
        %142 = sbr.rel (%p139) target = $region12
      $region11: #{tpu_custom_call.1} parent=5 // pred_region
        %s143 = ssub.s32 %s14, 1
        // Predicated region
        $region13: #{tpu_custom_call.1} parent=11 // pred_check
          %p144 = pneg %p61
        $region14: #{tpu_custom_call.1} parent=11 // pred_check_branch
          %146 = sbr.rel (%p144) target = $region16
        $region15: #{tpu_custom_call.1} parent=11 // pred_region
          %s148 = ssub.s32 5120, 5120
          %149 = vsyncadd [#allocation3], %s148
          %s150 = sshll.u32 [#allocation2], 4
          %s151 = int_to_ptr.vmem [resolvable:$true] %s150
          %156 = dma.hbm_to_vmem [thread:$0]  %s1, 5120, %s151, [#allocation3], 512, 512, 32
        $region16: #{tpu_custom_call.1} parent=11 // pred_fallthru
          _
        // Predicated region
        $region17: #{tpu_custom_call.1} parent=11 // pred_check
          %p157 = pneg %p82
        $region18: #{tpu_custom_call.1} parent=11 // pred_check_branch
          %159 = sbr.rel (%p157) target = $region20
        $region19: #{tpu_custom_call.1} parent=11 // pred_region
          _
        $region20: #{tpu_custom_call.1} parent=11 // pred_fallthru
          _
        // Predicated region
        $region21: #{tpu_custom_call.1} parent=11 // pred_check
          %p160 = pneg %p103
        $region22: #{tpu_custom_call.1} parent=11 // pred_check_branch
          %162 = sbr.rel (%p160) target = $region24
        $region23: #{tpu_custom_call.1} parent=11 // pred_region
          _
        $region24: #{tpu_custom_call.1} parent=11 // pred_fallthru
          _
      $region12: #{tpu_custom_call.1} parent=5 // pred_fallthru
        _
      %p163 = scmp.lt.s32.totalorder %s14, 2
      // Predicated region
      $region25: #{tpu_custom_call.1} parent=5 // pred_check
        %p164 = pneg %p163
      $region26: #{tpu_custom_call.1} parent=5 // pred_check_branch
        %166 = sbr.rel (%p164) target = $region28
      $region27: #{tpu_custom_call.1} parent=5 // pred_region
        // Predicated region
        $region29: #{tpu_custom_call.1} parent=27 // pred_check
          %p167 = pneg %p34
        $region30: #{tpu_custom_call.1} parent=27 // pred_check_branch
          %169 = sbr.rel (%p167) target = $region32
        $region31: #{tpu_custom_call.1} parent=27 // pred_region
          %p170 = scmp.lt.s32.totalorder %s14, 1
          %s171 = scalar_select %p170, %s14, 1
          %s172 = smul.addr %s171, 8
          %s173 = smul.addr %s172, 8
          %s174 = scalar_lea.vmem %s0, %s173
        $region32: #{tpu_custom_call.1} parent=27 // pred_fallthru
          _
      $region28: #{tpu_custom_call.1} parent=5 // pred_fallthru
        _
      %p175 = scmp.le.s32.totalorder 1, %s14
      %p176 = scmp.lt.s32.totalorder %s14, 3
      %p177 = pnand %p175, %p176
      %p178 = pneg %p177
      // Predicated region
      $region33: #{tpu_custom_call.1} parent=5 // pred_check
        _
      $region34: #{tpu_custom_call.1} parent=5 // pred_check_branch
        %180 = sbr.rel (%p177) target = $region36
      $region35: #{tpu_custom_call.1} parent=5 // pred_region
        %s181 = ssub.s32 %s14, 1
        // Predicated region
        $region37: #{tpu_custom_call.1} parent=35 // pred_check
          %p182 = pneg %p61
        $region38: #{tpu_custom_call.1} parent=35 // pred_check_branch
          %184 = sbr.rel (%p182) target = $region40
        $region39: #{tpu_custom_call.1} parent=35 // pred_region
          %185 = dma.done [#allocation3], 5120
        $region40: #{tpu_custom_call.1} parent=35 // pred_fallthru
          _
        %p186 = scmp.lt.s32.totalorder %s19, 1
        %s187 = scalar_select %p186, %s19, 1
        %s188 = smul.addr %s187, 8
        %s189 = smul.addr %s188, 8
        %s190 = scalar_lea.vmem %s0, %s189
        %p191 = pneg %p40
        %p192 = pneg %p37
        %p193 = pneg %p61
        %p194 = pneg %p58
        %p195 = pneg %p82
        %p196 = pneg %p79
        %p197 = pneg %p103
        %p198 = pneg %p100
        %p199 = pneg %p129
        %p200 = pneg %p126
        %s201 = sand.u32 %s116, 1
        %s202 = scalar_lea.sflag [#allocation4], %s201
        %s203 = sand.u32 %s116, 1
        %s204 = smul.addr %s203, 48
        %s205 = scalar_lea.vmem [#allocation5], %s204
        %p206 = scmp.lt.s32.totalorder %s19, 1
        %s207 = scalar_select %p206, %s19, 1
        %s208 = smul.addr %s207, 8
        %s209 = smul.addr %s208, 8
        %s210 = scalar_lea.vmem %s0, %s209
        %v211 = vld [vmem:[%s210] sm:$0xff]
        %v212 = vld [vmem:[%s210 + $0x8] sm:$0xff]
        %v213 = vld [vmem:[%s210 + $0x10] sm:$0xff]
        %v214 = vld [vmem:[%s210 + $0x18] sm:$0xff]
        %v215 = vld [vmem:[%s210 + $0x20] sm:$0xff]
        %v216 = vld [vmem:[%s210 + $0x28] sm:$0xff]
        %v217 = vld [vmem:[%s210 + $0x30] sm:$0xff]
        %v218 = vld [vmem:[%s210 + $0x38] sm:$0xff]
        %v219 = vld [vmem:[#allocation2] sm:$0xff]
        %v220 = vld [vmem:[#allocation2 + $0x8] sm:$0xff]
        %v221 = vld [vmem:[#allocation2 + $0x10] sm:$0xff]
        %v222 = vld [vmem:[#allocation2 + $0x18] sm:$0xff]
        %v223 = vld [vmem:[#allocation2 + $0x20] sm:$0xff]
        %v224 = vld [vmem:[#allocation2 + $0x28] sm:$0xff]
        %v225 = vld [vmem:[#allocation2 + $0x30] sm:$0xff]
        %v226 = vld [vmem:[#allocation2 + $0x38] sm:$0xff]
        %s227 = scalar_lea.vmem [#allocation2], 64
        %v228 = vld [vmem:[%s227] sm:$0xff]
        %v229 = vld [vmem:[%s227 + $0x8] sm:$0xff]
        %v230 = vld [vmem:[%s227 + $0x10] sm:$0xff]
        %v231 = vld [vmem:[%s227 + $0x18] sm:$0xff]
        %v232 = vld [vmem:[%s227 + $0x20] sm:$0xff]
        %v233 = vld [vmem:[%s227 + $0x28] sm:$0xff]
        %v234 = vld [vmem:[%s227 + $0x30] sm:$0xff]
        %v235 = vld [vmem:[%s227 + $0x38] sm:$0xff]
        %vm244 = vcmask 1046528
        %v245 = vrot.slane %v211, 1
        %v246 = vrot.slane %v212, 1
        %v247 = vsel %vm244, %v245, %v246
        %v248 = vrot.slane %v213, 1
        %v249 = vsel %vm244, %v246, %v248
        %v250 = vrot.slane %v214, 1
        %v251 = vsel %vm244, %v248, %v250
        %v252 = vrot.slane %v215, 1
        %v253 = vsel %vm244, %v250, %v252
        %v254 = vrot.slane %v216, 1
        %v255 = vsel %vm244, %v252, %v254
        %v256 = vrot.slane %v217, 1
        %v257 = vsel %vm244, %v254, %v256
        %v258 = vrot.slane %v218, 1
        %v259 = vsel %vm244, %v256, %v258
        %vm260 = vcmask 130048
        %v261 = vsel %vm260, %v247, 0
        %v263 = vsel %vm260, %v249, 0
        %v265 = vsel %vm260, %v251, 0
        %v267 = vsel %vm260, %v253, 0
        %v269 = vsel %vm260, %v255, 0
        %v271 = vsel %vm260, %v257, 0
        %v273 = vsel %vm260, %v259, 0
        %v275 = vsel %vm260, %v258, 0
        %277 = vmatprep.subr.mxu0 %v229
        %278 = vmatpush1.msra.mxu0 %v228
        %279 = vmatprep.subr.mxu0 %v233
        %280 = vmatpush1.msra.mxu0 %v232
        %281 = vmatprep.subr.mxu0 0.0
        %282 = vmatpush1.msra.mxu0 0.0
        %283 = vmatprep.subr.mxu0 0.0
        %284 = vmatpush1.msra.mxu0 0.0
        %285 = vmatprep.subr.mxu0 0.0
        %286 = vmatpush1.msra.mxu0 0.0
        %287 = vmatprep.subr.mxu0 0.0
        %288 = vmatpush1.msra.mxu0 0.0
        %289 = vmatprep.subr.mxu0 0.0
        %290 = vmatpush1.msra.mxu0 0.0
        %291 = vmatprep.subr.mxu0 0.0
        %292 = vmatpush1.msra.mxu0 0.0
        %293 = vmatprep.subr.mxu0 0.0
        %294 = vmatpush1.msra.mxu0 0.0
        %295 = vmatprep.subr.mxu0 0.0
        %296 = vmatpush1.msra.mxu0 0.0
        %297 = vmatprep.subr.mxu0 0.0
        %298 = vmatpush1.msra.mxu0 0.0
        %299 = vmatprep.subr.mxu0 0.0
        %300 = vmatpush1.msra.mxu0 0.0
        %301 = vmatprep.subr.mxu0 0.0
        %302 = vmatpush1.msra.mxu0 0.0
        %303 = vmatprep.subr.mxu0 0.0
        %304 = vmatpush1.msra.mxu0 0.0
        %305 = vmatprep.subr.mxu0 0.0
        %306 = vmatpush1.msra.mxu0 0.0
        %307 = vmatprep.subr.mxu0 0.0
        %308 = vmatpush1.msra.mxu0 0.0
        %309 = vmatprep.subr.mxu0 0.0
        %310 = vmatpush1.msra.mxu0 0.0
        %311 = vmatprep.subr.mxu0 0.0
        %312 = vmatpush1.msra.mxu0 0.0
        %313 = vmatprep.subr.mxu0 0.0
        %314 = vmatpush1.msra.mxu0 0.0
        %315 = vmatprep.subr.mxu0 0.0
        %316 = vmatpush1.msra.mxu0 0.0
        %317 = vmatprep.subr.mxu0 0.0
        %318 = vmatpush1.msra.mxu0 0.0
        %319 = vmatprep.subr.mxu0 0.0
        %320 = vmatpush1.msra.mxu0 0.0
        %321 = vmatprep.subr.mxu0 0.0
        %322 = vmatpush1.msra.mxu0 0.0
        %323 = vmatprep.subr.mxu0 0.0
        %324 = vmatpush1.msra.mxu0 0.0
        %325 = vmatprep.subr.mxu0 0.0
        %326 = vmatpush1.msra.mxu0 0.0
        %327 = vmatprep.subr.mxu0 0.0
        %328 = vmatpush1.msra.mxu0 0.0
        %329 = vmatprep.subr.mxu0 0.0
        %330 = vmatpush1.msra.mxu0 0.0
        %331 = vmatprep.subr.mxu0 0.0
        %332 = vmatpush1.msra.mxu0 0.0
        %333 = vmatprep.subr.mxu0 0.0
        %334 = vmatpush1.msra.mxu0 0.0
        %335 = vmatprep.subr.mxu0 0.0
        %336 = vmatpush1.msra.mxu0 0.0
        %337 = vmatprep.subr.mxu0 0.0
        %338 = vmatpush1.msra.mxu0 0.0
        %339 = vmatprep.subr.mxu0 0.0
        %340 = vmatpush1.msra.mxu0 0.0
        %341 = vmatprep.mubr.f32.mxu0 0.0
        %342 = vmatmul.mubr.f32.gmra.mrb[0].mxu0 %v261
        %v343 = vpop.f32.mrb[0].mxu0
        %v344 = vadd.f32 0.0, %v343
        %v345 = vpop.f32.mrb[0].mxu0
        %v346 = vadd.f32 0.0, %v345
        %347 = vmatprep.mubr.f32.mxu0 0.0
        %348 = vmatmul.mubr.f32.gmra.mrb[0].mxu0 %v263
        %v349 = vpop.f32.mrb[0].mxu0
        %v350 = vadd.f32 0.0, %v349
        %v351 = vpop.f32.mrb[0].mxu0
        %v352 = vadd.f32 0.0, %v351
        %353 = vmatprep.mubr.f32.mxu0 0.0
        %354 = vmatmul.mubr.f32.gmra.mrb[0].mxu0 %v265
        %v355 = vpop.f32.mrb[0].mxu0
        %v356 = vadd.f32 0.0, %v355
        %v357 = vpop.f32.mrb[0].mxu0
        %v358 = vadd.f32 0.0, %v357
        %359 = vmatprep.mubr.f32.mxu0 0.0
        %360 = vmatmul.mubr.f32.gmra.mrb[0].mxu0 %v267
        %v361 = vpop.f32.mrb[0].mxu0
        %v362 = vadd.f32 0.0, %v361
        %v363 = vpop.f32.mrb[0].mxu0
        %v364 = vadd.f32 0.0, %v363
        %365 = vmatprep.mubr.f32.mxu0 0.0
        %366 = vmatmul.mubr.f32.gmra.mrb[0].mxu0 %v269
        %v367 = vpop.f32.mrb[0].mxu0
        %v368 = vadd.f32 0.0, %v367
        %v369 = vpop.f32.mrb[0].mxu0
        %v370 = vadd.f32 0.0, %v369
        %371 = vmatprep.mubr.f32.mxu0 0.0
        %372 = vmatmul.mubr.f32.gmra.mrb[0].mxu0 %v271
        %v373 = vpop.f32.mrb[0].mxu0
        %v374 = vadd.f32 0.0, %v373
        %v375 = vpop.f32.mrb[0].mxu0
        %v376 = vadd.f32 0.0, %v375
        %377 = vmatprep.mubr.f32.mxu0 0.0
        %378 = vmatmul.mubr.f32.gmra.mrb[0].mxu0 %v273
        %v379 = vpop.f32.mrb[0].mxu0
        %v380 = vadd.f32 0.0, %v379
        %v381 = vpop.f32.mrb[0].mxu0
        %v382 = vadd.f32 0.0, %v381
        %383 = vmatprep.mubr.f32.mxu0 0.0
        %384 = vmatmul.mubr.f32.gmra.mrb[0].mxu0 %v275
        %v385 = vpop.f32.mrb[0].mxu0
        %v386 = vadd.f32 0.0, %v385
        %v387 = vpop.f32.mrb[0].mxu0
        %v388 = vadd.f32 0.0, %v387
        %389 = vdwg.mxu0
        %390 = vmatprep.subr.mxu0 %v231
        %391 = vmatpush1.msra.mxu0 %v230
        %392 = vmatprep.subr.mxu0 %v235
        %393 = vmatpush1.msra.mxu0 %v234
        %394 = vmatprep.subr.mxu0 0.0
        %395 = vmatpush1.msra.mxu0 0.0
        %396 = vmatprep.subr.mxu0 0.0
        %397 = vmatpush1.msra.mxu0 0.0
        %398 = vmatprep.subr.mxu0 0.0
        %399 = vmatpush1.msra.mxu0 0.0
        %400 = vmatprep.subr.mxu0 0.0
        %401 = vmatpush1.msra.mxu0 0.0
        %402 = vmatprep.subr.mxu0 0.0
        %403 = vmatpush1.msra.mxu0 0.0
        %404 = vmatprep.subr.mxu0 0.0
        %405 = vmatpush1.msra.mxu0 0.0
        %406 = vmatprep.subr.mxu0 0.0
        %407 = vmatpush1.msra.mxu0 0.0
        %408 = vmatprep.subr.mxu0 0.0
        %409 = vmatpush1.msra.mxu0 0.0
        %410 = vmatprep.subr.mxu0 0.0
        %411 = vmatpush1.msra.mxu0 0.0
        %412 = vmatprep.subr.mxu0 0.0
        %413 = vmatpush1.msra.mxu0 0.0
        %414 = vmatprep.subr.mxu0 0.0
        %415 = vmatpush1.msra.mxu0 0.0
        %416 = vmatprep.subr.mxu0 0.0
        %417 = vmatpush1.msra.mxu0 0.0
        %418 = vmatprep.subr.mxu0 0.0
        %419 = vmatpush1.msra.mxu0 0.0
        %420 = vmatprep.subr.mxu0 0.0
        %421 = vmatpush1.msra.mxu0 0.0
        %422 = vmatprep.subr.mxu0 0.0
        %423 = vmatpush1.msra.mxu0 0.0
        %424 = vmatprep.subr.mxu0 0.0
        %425 = vmatpush1.msra.mxu0 0.0
        %426 = vmatprep.subr.mxu0 0.0
        %427 = vmatpush1.msra.mxu0 0.0
        %428 = vmatprep.subr.mxu0 0.0
        %429 = vmatpush1.msra.mxu0 0.0
        %430 = vmatprep.subr.mxu0 0.0
        %431 = vmatpush1.msra.mxu0 0.0
        %432 = vmatprep.subr.mxu0 0.0
        %433 = vmatpush1.msra.mxu0 0.0
        %434 = vmatprep.subr.mxu0 0.0
        %435 = vmatpush1.msra.mxu0 0.0
        %436 = vmatprep.subr.mxu0 0.0
        %437 = vmatpush1.msra.mxu0 0.0
        %438 = vmatprep.subr.mxu0 0.0
        %439 = vmatpush1.msra.mxu0 0.0
        %440 = vmatprep.subr.mxu0 0.0
        %441 = vmatpush1.msra.mxu0 0.0
        %442 = vmatprep.subr.mxu0 0.0
        %443 = vmatpush1.msra.mxu0 0.0
        %444 = vmatprep.subr.mxu0 0.0
        %445 = vmatpush1.msra.mxu0 0.0
        %446 = vmatprep.subr.mxu0 0.0
        %447 = vmatpush1.msra.mxu0 0.0
        %448 = vmatprep.subr.mxu0 0.0
        %449 = vmatpush1.msra.mxu0 0.0
        %450 = vmatprep.subr.mxu0 0.0
        %451 = vmatpush1.msra.mxu0 0.0
        %452 = vmatprep.subr.mxu0 0.0
        %453 = vmatpush1.msra.mxu0 0.0
        %454 = vmatprep.mubr.f32.mxu0 0.0
        %455 = vmatmul.mubr.f32.gmra.mrb[0].mxu0 %v261
        %v456 = vpop.f32.mrb[0].mxu0
        %v457 = vadd.f32 0.0, %v456
        %v458 = vpop.f32.mrb[0].mxu0
        %v459 = vadd.f32 0.0, %v458
        %460 = vmatprep.mubr.f32.mxu0 0.0
        %461 = vmatmul.mubr.f32.gmra.mrb[0].mxu0 %v263
        %v462 = vpop.f32.mrb[0].mxu0
        %v463 = vadd.f32 0.0, %v462
        %v464 = vpop.f32.mrb[0].mxu0
        %v465 = vadd.f32 0.0, %v464
        %466 = vmatprep.mubr.f32.mxu0 0.0
        %467 = vmatmul.mubr.f32.gmra.mrb[0].mxu0 %v265
        %v468 = vpop.f32.mrb[0].mxu0
        %v469 = vadd.f32 0.0, %v468
        %v470 = vpop.f32.mrb[0].mxu0
        %v471 = vadd.f32 0.0, %v470
        %472 = vmatprep.mubr.f32.mxu0 0.0
        %473 = vmatmul.mubr.f32.gmra.mrb[0].mxu0 %v267
        %v474 = vpop.f32.mrb[0].mxu0
        %v475 = vadd.f32 0.0, %v474
        %v476 = vpop.f32.mrb[0].mxu0
        %v477 = vadd.f32 0.0, %v476
        %478 = vmatprep.mubr.f32.mxu0 0.0
        %479 = vmatmul.mubr.f32.gmra.mrb[0].mxu0 %v269
        %v480 = vpop.f32.mrb[0].mxu0
        %v481 = vadd.f32 0.0, %v480
        %v482 = vpop.f32.mrb[0].mxu0
        %v483 = vadd.f32 0.0, %v482
        %484 = vmatprep.mubr.f32.mxu0 0.0
        %485 = vmatmul.mubr.f32.gmra.mrb[0].mxu0 %v271
        %v486 = vpop.f32.mrb[0].mxu0
        %v487 = vadd.f32 0.0, %v486
        %v488 = vpop.f32.mrb[0].mxu0
        %v489 = vadd.f32 0.0, %v488
        %490 = vmatprep.mubr.f32.mxu0 0.0
        %491 = vmatmul.mubr.f32.gmra.mrb[0].mxu0 %v273
        %v492 = vpop.f32.mrb[0].mxu0
        %v493 = vadd.f32 0.0, %v492
        %v494 = vpop.f32.mrb[0].mxu0
        %v495 = vadd.f32 0.0, %v494
        %496 = vmatprep.mubr.f32.mxu0 0.0
        %497 = vmatmul.mubr.f32.gmra.mrb[0].mxu0 %v275
        %v498 = vpop.f32.mrb[0].mxu0
        %v499 = vadd.f32 0.0, %v498
        %v500 = vpop.f32.mrb[0].mxu0
        %v501 = vadd.f32 0.0, %v500
        %502 = vdwg.mxu0
        %v503 = vsel %vm260, %v211, 0
        %v505 = vsel %vm260, %v212, 0
        %v507 = vsel %vm260, %v213, 0
        %v509 = vsel %vm260, %v214, 0
        %v511 = vsel %vm260, %v215, 0
        %v513 = vsel %vm260, %v216, 0
        %v515 = vsel %vm260, %v217, 0
        %v517 = vsel %vm260, %v218, 0
        %519 = vmatprep.subr.mxu0 %v220
        %520 = vmatpush1.msra.mxu0 %v219
        %521 = vmatprep.subr.mxu0 %v224
        %522 = vmatpush1.msra.mxu0 %v223
        %523 = vmatprep.subr.mxu0 0.0
        %524 = vmatpush1.msra.mxu0 0.0
        %525 = vmatprep.subr.mxu0 0.0
        %526 = vmatpush1.msra.mxu0 0.0
        %527 = vmatprep.subr.mxu0 0.0
        %528 = vmatpush1.msra.mxu0 0.0
        %529 = vmatprep.subr.mxu0 0.0
        %530 = vmatpush1.msra.mxu0 0.0
        %531 = vmatprep.subr.mxu0 0.0
        %532 = vmatpush1.msra.mxu0 0.0
        %533 = vmatprep.subr.mxu0 0.0
        %534 = vmatpush1.msra.mxu0 0.0
        %535 = vmatprep.subr.mxu0 0.0
        %536 = vmatpush1.msra.mxu0 0.0
        %537 = vmatprep.subr.mxu0 0.0
        %538 = vmatpush1.msra.mxu0 0.0
        %539 = vmatprep.subr.mxu0 0.0
        %540 = vmatpush1.msra.mxu0 0.0
        %541 = vmatprep.subr.mxu0 0.0
        %542 = vmatpush1.msra.mxu0 0.0
        %543 = vmatprep.subr.mxu0 0.0
        %544 = vmatpush1.msra.mxu0 0.0
        %545 = vmatprep.subr.mxu0 0.0
        %546 = vmatpush1.msra.mxu0 0.0
        %547 = vmatprep.subr.mxu0 0.0
        %548 = vmatpush1.msra.mxu0 0.0
        %549 = vmatprep.subr.mxu0 0.0
        %550 = vmatpush1.msra.mxu0 0.0
        %551 = vmatprep.subr.mxu0 0.0
        %552 = vmatpush1.msra.mxu0 0.0
        %553 = vmatprep.subr.mxu0 0.0
        %554 = vmatpush1.msra.mxu0 0.0
        %555 = vmatprep.subr.mxu0 0.0
        %556 = vmatpush1.msra.mxu0 0.0
        %557 = vmatprep.subr.mxu0 0.0
        %558 = vmatpush1.msra.mxu0 0.0
        %559 = vmatprep.subr.mxu0 0.0
        %560 = vmatpush1.msra.mxu0 0.0
        %561 = vmatprep.subr.mxu0 0.0
        %562 = vmatpush1.msra.mxu0 0.0
        %563 = vmatprep.subr.mxu0 0.0
        %564 = vmatpush1.msra.mxu0 0.0
        %565 = vmatprep.subr.mxu0 0.0
        %566 = vmatpush1.msra.mxu0 0.0
        %567 = vmatprep.subr.mxu0 0.0
        %568 = vmatpush1.msra.mxu0 0.0
        %569 = vmatprep.subr.mxu0 0.0
        %570 = vmatpush1.msra.mxu0 0.0
        %571 = vmatprep.subr.mxu0 0.0
        %572 = vmatpush1.msra.mxu0 0.0
        %573 = vmatprep.subr.mxu0 0.0
        %574 = vmatpush1.msra.mxu0 0.0
        %575 = vmatprep.subr.mxu0 0.0
        %576 = vmatpush1.msra.mxu0 0.0
        %577 = vmatprep.subr.mxu0 0.0
        %578 = vmatpush1.msra.mxu0 0.0
        %579 = vmatprep.subr.mxu0 0.0
        %580 = vmatpush1.msra.mxu0 0.0
        %581 = vmatprep.subr.mxu0 0.0
        %582 = vmatpush1.msra.mxu0 0.0
        %583 = vmatprep.mubr.f32.mxu0 0.0
        %584 = vmatmul.mubr.f32.gmra.mrb[0].mxu0 %v503
        %v585 = vpop.f32.mrb[0].mxu0
        %v586 = vadd.f32 %v344, %v585
        %v587 = vpop.f32.mrb[0].mxu0
        %v588 = vadd.f32 %v346, %v587
        %589 = vmatprep.mubr.f32.mxu0 0.0
        %590 = vmatmul.mubr.f32.gmra.mrb[0].mxu0 %v505
        %v591 = vpop.f32.mrb[0].mxu0
        %v592 = vadd.f32 %v350, %v591
        %v593 = vpop.f32.mrb[0].mxu0
        %v594 = vadd.f32 %v352, %v593
        %595 = vmatprep.mubr.f32.mxu0 0.0
        %596 = vmatmul.mubr.f32.gmra.mrb[0].mxu0 %v507
        %v597 = vpop.f32.mrb[0].mxu0
        %v598 = vadd.f32 %v356, %v597
        %v599 = vpop.f32.mrb[0].mxu0
        %v600 = vadd.f32 %v358, %v599
        %601 = vmatprep.mubr.f32.mxu0 0.0
        %602 = vmatmul.mubr.f32.gmra.mrb[0].mxu0 %v509
        %v603 = vpop.f32.mrb[0].mxu0
        %v604 = vadd.f32 %v362, %v603
        %v605 = vpop.f32.mrb[0].mxu0
        %v606 = vadd.f32 %v364, %v605
        %607 = vmatprep.mubr.f32.mxu0 0.0
        %608 = vmatmul.mubr.f32.gmra.mrb[0].mxu0 %v511
        %v609 = vpop.f32.mrb[0].mxu0
        %v610 = vadd.f32 %v368, %v609
        %v611 = vpop.f32.mrb[0].mxu0
        %v612 = vadd.f32 %v370, %v611
        %613 = vmatprep.mubr.f32.mxu0 0.0
        %614 = vmatmul.mubr.f32.gmra.mrb[0].mxu0 %v513
        %v615 = vpop.f32.mrb[0].mxu0
        %v616 = vadd.f32 %v374, %v615
        %v617 = vpop.f32.mrb[0].mxu0
        %v618 = vadd.f32 %v376, %v617
        %619 = vmatprep.mubr.f32.mxu0 0.0
        %620 = vmatmul.mubr.f32.gmra.mrb[0].mxu0 %v515
        %v621 = vpop.f32.mrb[0].mxu0
        %v622 = vadd.f32 %v380, %v621
        %v623 = vpop.f32.mrb[0].mxu0
        %v624 = vadd.f32 %v382, %v623
        %625 = vmatprep.mubr.f32.mxu0 0.0
        %626 = vmatmul.mubr.f32.gmra.mrb[0].mxu0 %v517
        %v627 = vpop.f32.mrb[0].mxu0
        %v628 = vadd.f32 %v386, %v627
        %v629 = vpop.f32.mrb[0].mxu0
        %v630 = vadd.f32 %v388, %v629
        %631 = vdwg.mxu0
        %632 = vmatprep.subr.mxu0 %v222
        %633 = vmatpush1.msra.mxu0 %v221
        %634 = vmatprep.subr.mxu0 %v226
        %635 = vmatpush1.msra.mxu0 %v225
        %636 = vmatprep.subr.mxu0 0.0
        %637 = vmatpush1.msra.mxu0 0.0
        %638 = vmatprep.subr.mxu0 0.0
        %639 = vmatpush1.msra.mxu0 0.0
        %640 = vmatprep.subr.mxu0 0.0
        %641 = vmatpush1.msra.mxu0 0.0
        %642 = vmatprep.subr.mxu0 0.0
        %643 = vmatpush1.msra.mxu0 0.0
        %644 = vmatprep.subr.mxu0 0.0
        %645 = vmatpush1.msra.mxu0 0.0
        %646 = vmatprep.subr.mxu0 0.0
        %647 = vmatpush1.msra.mxu0 0.0
        %648 = vmatprep.subr.mxu0 0.0
        %649 = vmatpush1.msra.mxu0 0.0
        %650 = vmatprep.subr.mxu0 0.0
        %651 = vmatpush1.msra.mxu0 0.0
        %652 = vmatprep.subr.mxu0 0.0
        %653 = vmatpush1.msra.mxu0 0.0
        %654 = vmatprep.subr.mxu0 0.0
        %655 = vmatpush1.msra.mxu0 0.0
        %656 = vmatprep.subr.mxu0 0.0
        %657 = vmatpush1.msra.mxu0 0.0
        %658 = vmatprep.subr.mxu0 0.0
        %659 = vmatpush1.msra.mxu0 0.0
        %660 = vmatprep.subr.mxu0 0.0
        %661 = vmatpush1.msra.mxu0 0.0
        %662 = vmatprep.subr.mxu0 0.0
        %663 = vmatpush1.msra.mxu0 0.0
        %664 = vmatprep.subr.mxu0 0.0
        %665 = vmatpush1.msra.mxu0 0.0
        %666 = vmatprep.subr.mxu0 0.0
        %667 = vmatpush1.msra.mxu0 0.0
        %668 = vmatprep.subr.mxu0 0.0
        %669 = vmatpush1.msra.mxu0 0.0
        %670 = vmatprep.subr.mxu0 0.0
        %671 = vmatpush1.msra.mxu0 0.0
        %672 = vmatprep.subr.mxu0 0.0
        %673 = vmatpush1.msra.mxu0 0.0
        %674 = vmatprep.subr.mxu0 0.0
        %675 = vmatpush1.msra.mxu0 0.0
        %676 = vmatprep.subr.mxu0 0.0
        %677 = vmatpush1.msra.mxu0 0.0
        %678 = vmatprep.subr.mxu0 0.0
        %679 = vmatpush1.msra.mxu0 0.0
        %680 = vmatprep.subr.mxu0 0.0
        %681 = vmatpush1.msra.mxu0 0.0
        %682 = vmatprep.subr.mxu0 0.0
        %683 = vmatpush1.msra.mxu0 0.0
        %684 = vmatprep.subr.mxu0 0.0
        %685 = vmatpush1.msra.mxu0 0.0
        %686 = vmatprep.subr.mxu0 0.0
        %687 = vmatpush1.msra.mxu0 0.0
        %688 = vmatprep.subr.mxu0 0.0
        %689 = vmatpush1.msra.mxu0 0.0
        %690 = vmatprep.subr.mxu0 0.0
        %691 = vmatpush1.msra.mxu0 0.0
        %692 = vmatprep.subr.mxu0 0.0
        %693 = vmatpush1.msra.mxu0 0.0
        %694 = vmatprep.subr.mxu0 0.0
        %695 = vmatpush1.msra.mxu0 0.0
        %696 = vmatprep.mubr.f32.mxu0 0.0
        %697 = vmatmul.mubr.f32.gmra.mrb[0].mxu0 %v503
        %v698 = vpop.f32.mrb[0].mxu0
        %v699 = vadd.f32 %v457, %v698
        %v700 = vpop.f32.mrb[0].mxu0
        %v701 = vadd.f32 %v459, %v700
        %702 = vmatprep.mubr.f32.mxu0 0.0
        %703 = vmatmul.mubr.f32.gmra.mrb[0].mxu0 %v505
        %v704 = vpop.f32.mrb[0].mxu0
        %v705 = vadd.f32 %v463, %v704
        %v706 = vpop.f32.mrb[0].mxu0
        %v707 = vadd.f32 %v465, %v706
        %708 = vmatprep.mubr.f32.mxu0 0.0
        %709 = vmatmul.mubr.f32.gmra.mrb[0].mxu0 %v507
        %v710 = vpop.f32.mrb[0].mxu0
        %v711 = vadd.f32 %v469, %v710
        %v712 = vpop.f32.mrb[0].mxu0
        %v713 = vadd.f32 %v471, %v712
        %714 = vmatprep.mubr.f32.mxu0 0.0
        %715 = vmatmul.mubr.f32.gmra.mrb[0].mxu0 %v509
        %v716 = vpop.f32.mrb[0].mxu0
        %v717 = vadd.f32 %v475, %v716
        %v718 = vpop.f32.mrb[0].mxu0
        %v719 = vadd.f32 %v477, %v718
        %720 = vmatprep.mubr.f32.mxu0 0.0
        %721 = vmatmul.mubr.f32.gmra.mrb[0].mxu0 %v511
        %v722 = vpop.f32.mrb[0].mxu0
        %v723 = vadd.f32 %v481, %v722
        %v724 = vpop.f32.mrb[0].mxu0
        %v725 = vadd.f32 %v483, %v724
        %726 = vmatprep.mubr.f32.mxu0 0.0
        %727 = vmatmul.mubr.f32.gmra.mrb[0].mxu0 %v513
        %v728 = vpop.f32.mrb[0].mxu0
        %v729 = vadd.f32 %v487, %v728
        %v730 = vpop.f32.mrb[0].mxu0
        %v731 = vadd.f32 %v489, %v730
        %732 = vmatprep.mubr.f32.mxu0 0.0
        %733 = vmatmul.mubr.f32.gmra.mrb[0].mxu0 %v515
        %v734 = vpop.f32.mrb[0].mxu0
        %v735 = vadd.f32 %v493, %v734
        %v736 = vpop.f32.mrb[0].mxu0
        %v737 = vadd.f32 %v495, %v736
        %738 = vmatprep.mubr.f32.mxu0 0.0
        %739 = vmatmul.mubr.f32.gmra.mrb[0].mxu0 %v517
        %v740 = vpop.f32.mrb[0].mxu0
        %v741 = vadd.f32 %v499, %v740
        %v742 = vpop.f32.mrb[0].mxu0
        %v743 = vadd.f32 %v501, %v742
        %744 = vdwg.mxu0
        %s745 = scalar_lea.vmem [#allocation2], 128
        %v746 = vld [vmem:[%s745] sm:$0xff]
        %v747 = vld [vmem:[%s745 + $0x8] sm:$0xff]
        %v748 = vld [vmem:[%s745 + $0x10] sm:$0xff]
        %v749 = vld [vmem:[%s745 + $0x18] sm:$0xff]
        %v750 = vld [vmem:[%s745 + $0x20] sm:$0xff]
        %v751 = vld [vmem:[%s745 + $0x28] sm:$0xff]
        %v752 = vld [vmem:[%s745 + $0x30] sm:$0xff]
        %v753 = vld [vmem:[%s745 + $0x38] sm:$0xff]
        %vm754 = vcmask 1045504
        %v755 = vrot.slane %v211, 2
        %v756 = vrot.slane %v212, 2
        %v757 = vsel %vm754, %v755, %v756
        %v758 = vrot.slane %v213, 2
        %v759 = vsel %vm754, %v756, %v758
        %v760 = vrot.slane %v214, 2
        %v761 = vsel %vm754, %v758, %v760
        %v762 = vrot.slane %v215, 2
        %v763 = vsel %vm754, %v760, %v762
        %v764 = vrot.slane %v216, 2
        %v765 = vsel %vm754, %v762, %v764
        %v766 = vrot.slane %v217, 2
        %v767 = vsel %vm754, %v764, %v766
        %v768 = vrot.slane %v218, 2
        %v769 = vsel %vm754, %v766, %v768
        %v770 = vsel %vm260, %v757, 0
        %v772 = vsel %vm260, %v759, 0
        %v774 = vsel %vm260, %v761, 0
        %v776 = vsel %vm260, %v763, 0
        %v778 = vsel %vm260, %v765, 0
        %v780 = vsel %vm260, %v767, 0
        %v782 = vsel %vm260, %v769, 0
        %v784 = vsel %vm260, %v768, 0
        %786 = vmatprep.subr.mxu0 %v747
        %787 = vmatpush1.msra.mxu0 %v746
        %788 = vmatprep.subr.mxu0 %v751
        %789 = vmatpush1.msra.mxu0 %v750
        %790 = vmatprep.subr.mxu0 0.0
        %791 = vmatpush1.msra.mxu0 0.0
        %792 = vmatprep.subr.mxu0 0.0
        %793 = vmatpush1.msra.mxu0 0.0
        %794 = vmatprep.subr.mxu0 0.0
        %795 = vmatpush1.msra.mxu0 0.0
        %796 = vmatprep.subr.mxu0 0.0
        %797 = vmatpush1.msra.mxu0 0.0
        %798 = vmatprep.subr.mxu0 0.0
        %799 = vmatpush1.msra.mxu0 0.0
        %800 = vmatprep.subr.mxu0 0.0
        %801 = vmatpush1.msra.mxu0 0.0
        %802 = vmatprep.subr.mxu0 0.0
        %803 = vmatpush1.msra.mxu0 0.0
        %804 = vmatprep.subr.mxu0 0.0
        %805 = vmatpush1.msra.mxu0 0.0
        %806 = vmatprep.subr.mxu0 0.0
        %807 = vmatpush1.msra.mxu0 0.0
        %808 = vmatprep.subr.mxu0 0.0
        %809 = vmatpush1.msra.mxu0 0.0
        %810 = vmatprep.subr.mxu0 0.0
        %811 = vmatpush1.msra.mxu0 0.0
        %812 = vmatprep.subr.mxu0 0.0
        %813 = vmatpush1.msra.mxu0 0.0
        %814 = vmatprep.subr.mxu0 0.0
        %815 = vmatpush1.msra.mxu0 0.0
        %816 = vmatprep.subr.mxu0 0.0
        %817 = vmatpush1.msra.mxu0 0.0
        %818 = vmatprep.subr.mxu0 0.0
        %819 = vmatpush1.msra.mxu0 0.0
        %820 = vmatprep.subr.mxu0 0.0
        %821 = vmatpush1.msra.mxu0 0.0
        %822 = vmatprep.subr.mxu0 0.0
        %823 = vmatpush1.msra.mxu0 0.0
        %824 = vmatprep.subr.mxu0 0.0
        %825 = vmatpush1.msra.mxu0 0.0
        %826 = vmatprep.subr.mxu0 0.0
        %827 = vmatpush1.msra.mxu0 0.0
        %828 = vmatprep.subr.mxu0 0.0
        %829 = vmatpush1.msra.mxu0 0.0
        %830 = vmatprep.subr.mxu0 0.0
        %831 = vmatpush1.msra.mxu0 0.0
        %832 = vmatprep.subr.mxu0 0.0
        %833 = vmatpush1.msra.mxu0 0.0
        %834 = vmatprep.subr.mxu0 0.0
        %835 = vmatpush1.msra.mxu0 0.0
        %836 = vmatprep.subr.mxu0 0.0
        %837 = vmatpush1.msra.mxu0 0.0
        %838 = vmatprep.subr.mxu0 0.0
        %839 = vmatpush1.msra.mxu0 0.0
        %840 = vmatprep.subr.mxu0 0.0
        %841 = vmatpush1.msra.mxu0 0.0
        %842 = vmatprep.subr.mxu0 0.0
        %843 = vmatpush1.msra.mxu0 0.0
        %844 = vmatprep.subr.mxu0 0.0
        %845 = vmatpush1.msra.mxu0 0.0
        %846 = vmatprep.subr.mxu0 0.0
        %847 = vmatpush1.msra.mxu0 0.0
        %848 = vmatprep.subr.mxu0 0.0
        %849 = vmatpush1.msra.mxu0 0.0
        %850 = vmatprep.mubr.f32.mxu0 0.0
        %851 = vmatmul.mubr.f32.gmra.mrb[0].mxu0 %v770
        %v852 = vpop.f32.mrb[0].mxu0
        %v853 = vadd.f32 0.0, %v852
        %v854 = vpop.f32.mrb[0].mxu0
        %v855 = vadd.f32 0.0, %v854
        %856 = vmatprep.mubr.f32.mxu0 0.0
        %857 = vmatmul.mubr.f32.gmra.mrb[0].mxu0 %v772
        %v858 = vpop.f32.mrb[0].mxu0
        %v859 = vadd.f32 0.0, %v858
        %v860 = vpop.f32.mrb[0].mxu0
        %v861 = vadd.f32 0.0, %v860
        %862 = vmatprep.mubr.f32.mxu0 0.0
        %863 = vmatmul.mubr.f32.gmra.mrb[0].mxu0 %v774
        %v864 = vpop.f32.mrb[0].mxu0
        %v865 = vadd.f32 0.0, %v864
        %v866 = vpop.f32.mrb[0].mxu0
        %v867 = vadd.f32 0.0, %v866
        %868 = vmatprep.mubr.f32.mxu0 0.0
        %869 = vmatmul.mubr.f32.gmra.mrb[0].mxu0 %v776
        %v870 = vpop.f32.mrb[0].mxu0
        %v871 = vadd.f32 0.0, %v870
        %v872 = vpop.f32.mrb[0].mxu0
        %v873 = vadd.f32 0.0, %v872
        %874 = vmatprep.mubr.f32.mxu0 0.0
        %875 = vmatmul.mubr.f32.gmra.mrb[0].mxu0 %v778
        %v876 = vpop.f32.mrb[0].mxu0
        %v877 = vadd.f32 0.0, %v876
        %v878 = vpop.f32.mrb[0].mxu0
        %v879 = vadd.f32 0.0, %v878
        %880 = vmatprep.mubr.f32.mxu0 0.0
        %881 = vmatmul.mubr.f32.gmra.mrb[0].mxu0 %v780
        %v882 = vpop.f32.mrb[0].mxu0
        %v883 = vadd.f32 0.0, %v882
        %v884 = vpop.f32.mrb[0].mxu0
        %v885 = vadd.f32 0.0, %v884
        %886 = vmatprep.mubr.f32.mxu0 0.0
        %887 = vmatmul.mubr.f32.gmra.mrb[0].mxu0 %v782
        %v888 = vpop.f32.mrb[0].mxu0
        %v889 = vadd.f32 0.0, %v888
        %v890 = vpop.f32.mrb[0].mxu0
        %v891 = vadd.f32 0.0, %v890
        %892 = vmatprep.mubr.f32.mxu0 0.0
        %893 = vmatmul.mubr.f32.gmra.mrb[0].mxu0 %v784
        %v894 = vpop.f32.mrb[0].mxu0
        %v895 = vadd.f32 0.0, %v894
        %v896 = vpop.f32.mrb[0].mxu0
        %v897 = vadd.f32 0.0, %v896
        %898 = vdwg.mxu0
        %899 = vmatprep.subr.mxu0 %v749
        %900 = vmatpush1.msra.mxu0 %v748
        %901 = vmatprep.subr.mxu0 %v753
        %902 = vmatpush1.msra.mxu0 %v752
        %903 = vmatprep.subr.mxu0 0.0
        %904 = vmatpush1.msra.mxu0 0.0
        %905 = vmatprep.subr.mxu0 0.0
        %906 = vmatpush1.msra.mxu0 0.0
        %907 = vmatprep.subr.mxu0 0.0
        %908 = vmatpush1.msra.mxu0 0.0
        %909 = vmatprep.subr.mxu0 0.0
        %910 = vmatpush1.msra.mxu0 0.0
        %911 = vmatprep.subr.mxu0 0.0
        %912 = vmatpush1.msra.mxu0 0.0
        %913 = vmatprep.subr.mxu0 0.0
        %914 = vmatpush1.msra.mxu0 0.0
        %915 = vmatprep.subr.mxu0 0.0
        %916 = vmatpush1.msra.mxu0 0.0
        %917 = vmatprep.subr.mxu0 0.0
        %918 = vmatpush1.msra.mxu0 0.0
        %919 = vmatprep.subr.mxu0 0.0
        %920 = vmatpush1.msra.mxu0 0.0
        %921 = vmatprep.subr.mxu0 0.0
        %922 = vmatpush1.msra.mxu0 0.0
        %923 = vmatprep.subr.mxu0 0.0
        %924 = vmatpush1.msra.mxu0 0.0
        %925 = vmatprep.subr.mxu0 0.0
        %926 = vmatpush1.msra.mxu0 0.0
        %927 = vmatprep.subr.mxu0 0.0
        %928 = vmatpush1.msra.mxu0 0.0
        %929 = vmatprep.subr.mxu0 0.0
        %930 = vmatpush1.msra.mxu0 0.0
        %931 = vmatprep.subr.mxu0 0.0
        %932 = vmatpush1.msra.mxu0 0.0
        %933 = vmatprep.subr.mxu0 0.0
        %934 = vmatpush1.msra.mxu0 0.0
        %935 = vmatprep.subr.mxu0 0.0
        %936 = vmatpush1.msra.mxu0 0.0
        %937 = vmatprep.subr.mxu0 0.0
        %938 = vmatpush1.msra.mxu0 0.0
        %939 = vmatprep.subr.mxu0 0.0
        %940 = vmatpush1.msra.mxu0 0.0
        %941 = vmatprep.subr.mxu0 0.0
        %942 = vmatpush1.msra.mxu0 0.0
        %943 = vmatprep.subr.mxu0 0.0
        %944 = vmatpush1.msra.mxu0 0.0
        %945 = vmatprep.subr.mxu0 0.0
        %946 = vmatpush1.msra.mxu0 0.0
        %947 = vmatprep.subr.mxu0 0.0
        %948 = vmatpush1.msra.mxu0 0.0
        %949 = vmatprep.subr.mxu0 0.0
        %950 = vmatpush1.msra.mxu0 0.0
        %951 = vmatprep.subr.mxu0 0.0
        %952 = vmatpush1.msra.mxu0 0.0
        %953 = vmatprep.subr.mxu0 0.0
        %954 = vmatpush1.msra.mxu0 0.0
        %955 = vmatprep.subr.mxu0 0.0
        %956 = vmatpush1.msra.mxu0 0.0
        %957 = vmatprep.subr.mxu0 0.0
        %958 = vmatpush1.msra.mxu0 0.0
        %959 = vmatprep.subr.mxu0 0.0
        %960 = vmatpush1.msra.mxu0 0.0
        %961 = vmatprep.subr.mxu0 0.0
        %962 = vmatpush1.msra.mxu0 0.0
        %963 = vmatprep.mubr.f32.mxu0 0.0
        %964 = vmatmul.mubr.f32.gmra.mrb[0].mxu0 %v770
        %v965 = vpop.f32.mrb[0].mxu0
        %v966 = vadd.f32 0.0, %v965
        %v967 = vpop.f32.mrb[0].mxu0
        %v968 = vadd.f32 0.0, %v967
        %969 = vmatprep.mubr.f32.mxu0 0.0
        %970 = vmatmul.mubr.f32.gmra.mrb[0].mxu0 %v772
        %v971 = vpop.f32.mrb[0].mxu0
        %v972 = vadd.f32 0.0, %v971
        %v973 = vpop.f32.mrb[0].mxu0
        %v974 = vadd.f32 0.0, %v973
        %975 = vmatprep.mubr.f32.mxu0 0.0
        %976 = vmatmul.mubr.f32.gmra.mrb[0].mxu0 %v774
        %v977 = vpop.f32.mrb[0].mxu0
        %v978 = vadd.f32 0.0, %v977
        %v979 = vpop.f32.mrb[0].mxu0
        %v980 = vadd.f32 0.0, %v979
        %981 = vmatprep.mubr.f32.mxu0 0.0
        %982 = vmatmul.mubr.f32.gmra.mrb[0].mxu0 %v776
        %v983 = vpop.f32.mrb[0].mxu0
        %v984 = vadd.f32 0.0, %v983
        %v985 = vpop.f32.mrb[0].mxu0
        %v986 = vadd.f32 0.0, %v985
        %987 = vmatprep.mubr.f32.mxu0 0.0
        %988 = vmatmul.mubr.f32.gmra.mrb[0].mxu0 %v778
        %v989 = vpop.f32.mrb[0].mxu0
        %v990 = vadd.f32 0.0, %v989
        %v991 = vpop.f32.mrb[0].mxu0
        %v992 = vadd.f32 0.0, %v991
        %993 = vmatprep.mubr.f32.mxu0 0.0
        %994 = vmatmul.mubr.f32.gmra.mrb[0].mxu0 %v780
        %v995 = vpop.f32.mrb[0].mxu0
        %v996 = vadd.f32 0.0, %v995
        %v997 = vpop.f32.mrb[0].mxu0
        %v998 = vadd.f32 0.0, %v997
        %999 = vmatprep.mubr.f32.mxu0 0.0
        %1000 = vmatmul.mubr.f32.gmra.mrb[0].mxu0 %v782
        %v1001 = vpop.f32.mrb[0].mxu0
        %v1002 = vadd.f32 0.0, %v1001
        %v1003 = vpop.f32.mrb[0].mxu0
        %v1004 = vadd.f32 0.0, %v1003
        %1005 = vmatprep.mubr.f32.mxu0 0.0
        %1006 = vmatmul.mubr.f32.gmra.mrb[0].mxu0 %v784
        %v1007 = vpop.f32.mrb[0].mxu0
        %v1008 = vadd.f32 0.0, %v1007
        %v1009 = vpop.f32.mrb[0].mxu0
        %v1010 = vadd.f32 0.0, %v1009
        %1011 = vdwg.mxu0
        %v1012 = vadd.f32 %v586, %v853
        %v1013 = vadd.f32 %v588, %v855
        %v1014 = vadd.f32 %v699, %v966
        %v1015 = vadd.f32 %v701, %v968
        %v1016 = vadd.f32 %v592, %v859
        %v1017 = vadd.f32 %v594, %v861
        %v1018 = vadd.f32 %v705, %v972
        %v1019 = vadd.f32 %v707, %v974
        %v1020 = vadd.f32 %v598, %v865
        %v1021 = vadd.f32 %v600, %v867
        %v1022 = vadd.f32 %v711, %v978
        %v1023 = vadd.f32 %v713, %v980
        %v1024 = vadd.f32 %v604, %v871
        %v1025 = vadd.f32 %v606, %v873
        %v1026 = vadd.f32 %v717, %v984
        %v1027 = vadd.f32 %v719, %v986
        %v1028 = vadd.f32 %v610, %v877
        %v1029 = vadd.f32 %v612, %v879
        %v1030 = vadd.f32 %v723, %v990
        %v1031 = vadd.f32 %v725, %v992
        %v1032 = vadd.f32 %v616, %v883
        %v1033 = vadd.f32 %v618, %v885
        %v1034 = vadd.f32 %v729, %v996
        %v1035 = vadd.f32 %v731, %v998
        %v1036 = vadd.f32 %v622, %v889
        %v1037 = vadd.f32 %v624, %v891
        %v1038 = vadd.f32 %v735, %v1002
        %v1039 = vadd.f32 %v737, %v1004
        %v1040 = vadd.f32 %v628, %v895
        %v1041 = vadd.f32 %v630, %v897
        %v1042 = vadd.f32 %v741, %v1008
        %v1043 = vadd.f32 %v743, %v1010
        %s1044 = scalar_lea.vmem [#allocation2], 192
        %v1045 = vld [vmem:[%s1044] sm:$0xff]
        %v1046 = vld [vmem:[%s1044 + $0x8] sm:$0xff]
        %v1047 = vld [vmem:[%s1044 + $0x10] sm:$0xff]
        %v1048 = vld [vmem:[%s1044 + $0x18] sm:$0xff]
        %v1049 = vld [vmem:[%s1044 + $0x20] sm:$0xff]
        %v1050 = vld [vmem:[%s1044 + $0x28] sm:$0xff]
        %v1051 = vld [vmem:[%s1044 + $0x30] sm:$0xff]
        %v1052 = vld [vmem:[%s1044 + $0x38] sm:$0xff]
        %vm1053 = vcmask 1044480
        %v1054 = vrot.slane %v211, 3
        %v1055 = vrot.slane %v212, 3
        %v1056 = vsel %vm1053, %v1054, %v1055
        %v1057 = vrot.slane %v213, 3
        %v1058 = vsel %vm1053, %v1055, %v1057
        %v1059 = vrot.slane %v214, 3
        %v1060 = vsel %vm1053, %v1057, %v1059
        %v1061 = vrot.slane %v215, 3
        %v1062 = vsel %vm1053, %v1059, %v1061
        %v1063 = vrot.slane %v216, 3
        %v1064 = vsel %vm1053, %v1061, %v1063
        %v1065 = vrot.slane %v217, 3
        %v1066 = vsel %vm1053, %v1063, %v1065
        %v1067 = vrot.slane %v218, 3
        %v1068 = vsel %vm1053, %v1065, %v1067
        %v1069 = vsel %vm260, %v1056, 0
        %v1071 = vsel %vm260, %v1058, 0
        %v1073 = vsel %vm260, %v1060, 0
        %v1075 = vsel %vm260, %v1062, 0
        %v1077 = vsel %vm260, %v1064, 0
        %v1079 = vsel %vm260, %v1066, 0
        %v1081 = vsel %vm260, %v1068, 0
        %v1083 = vsel %vm260, %v1067, 0
        %1085 = vmatprep.subr.mxu0 %v1046
        %1086 = vmatpush1.msra.mxu0 %v1045
        %1087 = vmatprep.subr.mxu0 %v1050
        %1088 = vmatpush1.msra.mxu0 %v1049
        %1089 = vmatprep.subr.mxu0 0.0
        %1090 = vmatpush1.msra.mxu0 0.0
        %1091 = vmatprep.subr.mxu0 0.0
        %1092 = vmatpush1.msra.mxu0 0.0
        %1093 = vmatprep.subr.mxu0 0.0
        %1094 = vmatpush1.msra.mxu0 0.0
        %1095 = vmatprep.subr.mxu0 0.0
        %1096 = vmatpush1.msra.mxu0 0.0
        %1097 = vmatprep.subr.mxu0 0.0
        %1098 = vmatpush1.msra.mxu0 0.0
        %1099 = vmatprep.subr.mxu0 0.0
        %1100 = vmatpush1.msra.mxu0 0.0
        %1101 = vmatprep.subr.mxu0 0.0
        %1102 = vmatpush1.msra.mxu0 0.0
        %1103 = vmatprep.subr.mxu0 0.0
        %1104 = vmatpush1.msra.mxu0 0.0
        %1105 = vmatprep.subr.mxu0 0.0
        %1106 = vmatpush1.msra.mxu0 0.0
        %1107 = vmatprep.subr.mxu0 0.0
        %1108 = vmatpush1.msra.mxu0 0.0
        %1109 = vmatprep.subr.mxu0 0.0
        %1110 = vmatpush1.msra.mxu0 0.0
        %1111 = vmatprep.subr.mxu0 0.0
        %1112 = vmatpush1.msra.mxu0 0.0
        %1113 = vmatprep.subr.mxu0 0.0
        %1114 = vmatpush1.msra.mxu0 0.0
        %1115 = vmatprep.subr.mxu0 0.0
        %1116 = vmatpush1.msra.mxu0 0.0
        %1117 = vmatprep.subr.mxu0 0.0
        %1118 = vmatpush1.msra.mxu0 0.0
        %1119 = vmatprep.subr.mxu0 0.0
        %1120 = vmatpush1.msra.mxu0 0.0
        %1121 = vmatprep.subr.mxu0 0.0
        %1122 = vmatpush1.msra.mxu0 0.0
        %1123 = vmatprep.subr.mxu0 0.0
        %1124 = vmatpush1.msra.mxu0 0.0
        %1125 = vmatprep.subr.mxu0 0.0
        %1126 = vmatpush1.msra.mxu0 0.0
        %1127 = vmatprep.subr.mxu0 0.0
        %1128 = vmatpush1.msra.mxu0 0.0
        %1129 = vmatprep.subr.mxu0 0.0
        %1130 = vmatpush1.msra.mxu0 0.0
        %1131 = vmatprep.subr.mxu0 0.0
        %1132 = vmatpush1.msra.mxu0 0.0
        %1133 = vmatprep.subr.mxu0 0.0
        %1134 = vmatpush1.msra.mxu0 0.0
        %1135 = vmatprep.subr.mxu0 0.0
        %1136 = vmatpush1.msra.mxu0 0.0
        %1137 = vmatprep.subr.mxu0 0.0
        %1138 = vmatpush1.msra.mxu0 0.0
        %1139 = vmatprep.subr.mxu0 0.0
        %1140 = vmatpush1.msra.mxu0 0.0
        %1141 = vmatprep.subr.mxu0 0.0
        %1142 = vmatpush1.msra.mxu0 0.0
        %1143 = vmatprep.subr.mxu0 0.0
        %1144 = vmatpush1.msra.mxu0 0.0
        %1145 = vmatprep.subr.mxu0 0.0
        %1146 = vmatpush1.msra.mxu0 0.0
        %1147 = vmatprep.subr.mxu0 0.0
        %1148 = vmatpush1.msra.mxu0 0.0
        %1149 = vmatprep.mubr.f32.mxu0 0.0
        %1150 = vmatmul.mubr.f32.gmra.mrb[0].mxu0 %v1069
        %v1151 = vpop.f32.mrb[0].mxu0
        %v1152 = vadd.f32 0.0, %v1151
        %v1153 = vpop.f32.mrb[0].mxu0
        %v1154 = vadd.f32 0.0, %v1153
        %1155 = vmatprep.mubr.f32.mxu0 0.0
        %1156 = vmatmul.mubr.f32.gmra.mrb[0].mxu0 %v1071
        %v1157 = vpop.f32.mrb[0].mxu0
        %v1158 = vadd.f32 0.0, %v1157
        %v1159 = vpop.f32.mrb[0].mxu0
        %v1160 = vadd.f32 0.0, %v1159
        %1161 = vmatprep.mubr.f32.mxu0 0.0
        %1162 = vmatmul.mubr.f32.gmra.mrb[0].mxu0 %v1073
        %v1163 = vpop.f32.mrb[0].mxu0
        %v1164 = vadd.f32 0.0, %v1163
        %v1165 = vpop.f32.mrb[0].mxu0
        %v1166 = vadd.f32 0.0, %v1165
        %1167 = vmatprep.mubr.f32.mxu0 0.0
        %1168 = vmatmul.mubr.f32.gmra.mrb[0].mxu0 %v1075
        %v1169 = vpop.f32.mrb[0].mxu0
        %v1170 = vadd.f32 0.0, %v1169
        %v1171 = vpop.f32.mrb[0].mxu0
        %v1172 = vadd.f32 0.0, %v1171
        %1173 = vmatprep.mubr.f32.mxu0 0.0
        %1174 = vmatmul.mubr.f32.gmra.mrb[0].mxu0 %v1077
        %v1175 = vpop.f32.mrb[0].mxu0
        %v1176 = vadd.f32 0.0, %v1175
        %v1177 = vpop.f32.mrb[0].mxu0
        %v1178 = vadd.f32 0.0, %v1177
        %1179 = vmatprep.mubr.f32.mxu0 0.0
        %1180 = vmatmul.mubr.f32.gmra.mrb[0].mxu0 %v1079
        %v1181 = vpop.f32.mrb[0].mxu0
        %v1182 = vadd.f32 0.0, %v1181
        %v1183 = vpop.f32.mrb[0].mxu0
        %v1184 = vadd.f32 0.0, %v1183
        %1185 = vmatprep.mubr.f32.mxu0 0.0
        %1186 = vmatmul.mubr.f32.gmra.mrb[0].mxu0 %v1081
        %v1187 = vpop.f32.mrb[0].mxu0
        %v1188 = vadd.f32 0.0, %v1187
        %v1189 = vpop.f32.mrb[0].mxu0
        %v1190 = vadd.f32 0.0, %v1189
        %1191 = vmatprep.mubr.f32.mxu0 0.0
        %1192 = vmatmul.mubr.f32.gmra.mrb[0].mxu0 %v1083
        %v1193 = vpop.f32.mrb[0].mxu0
        %v1194 = vadd.f32 0.0, %v1193
        %v1195 = vpop.f32.mrb[0].mxu0
        %v1196 = vadd.f32 0.0, %v1195
        %1197 = vdwg.mxu0
        %1198 = vmatprep.subr.mxu0 %v1048
        %1199 = vmatpush1.msra.mxu0 %v1047
        %1200 = vmatprep.subr.mxu0 %v1052
        %1201 = vmatpush1.msra.mxu0 %v1051
        %1202 = vmatprep.subr.mxu0 0.0
        %1203 = vmatpush1.msra.mxu0 0.0
        %1204 = vmatprep.subr.mxu0 0.0
        %1205 = vmatpush1.msra.mxu0 0.0
        %1206 = vmatprep.subr.mxu0 0.0
        %1207 = vmatpush1.msra.mxu0 0.0
        %1208 = vmatprep.subr.mxu0 0.0
        %1209 = vmatpush1.msra.mxu0 0.0
        %1210 = vmatprep.subr.mxu0 0.0
        %1211 = vmatpush1.msra.mxu0 0.0
        %1212 = vmatprep.subr.mxu0 0.0
        %1213 = vmatpush1.msra.mxu0 0.0
        %1214 = vmatprep.subr.mxu0 0.0
        %1215 = vmatpush1.msra.mxu0 0.0
        %1216 = vmatprep.subr.mxu0 0.0
        %1217 = vmatpush1.msra.mxu0 0.0
        %1218 = vmatprep.subr.mxu0 0.0
        %1219 = vmatpush1.msra.mxu0 0.0
        %1220 = vmatprep.subr.mxu0 0.0
        %1221 = vmatpush1.msra.mxu0 0.0
        %1222 = vmatprep.subr.mxu0 0.0
        %1223 = vmatpush1.msra.mxu0 0.0
        %1224 = vmatprep.subr.mxu0 0.0
        %1225 = vmatpush1.msra.mxu0 0.0
        %1226 = vmatprep.subr.mxu0 0.0
        %1227 = vmatpush1.msra.mxu0 0.0
        %1228 = vmatprep.subr.mxu0 0.0
        %1229 = vmatpush1.msra.mxu0 0.0
        %1230 = vmatprep.subr.mxu0 0.0
        %1231 = vmatpush1.msra.mxu0 0.0
        %1232 = vmatprep.subr.mxu0 0.0
        %1233 = vmatpush1.msra.mxu0 0.0
        %1234 = vmatprep.subr.mxu0 0.0
        %1235 = vmatpush1.msra.mxu0 0.0
        %1236 = vmatprep.subr.mxu0 0.0
        %1237 = vmatpush1.msra.mxu0 0.0
        %1238 = vmatprep.subr.mxu0 0.0
        %1239 = vmatpush1.msra.mxu0 0.0
        %1240 = vmatprep.subr.mxu0 0.0
        %1241 = vmatpush1.msra.mxu0 0.0
        %1242 = vmatprep.subr.mxu0 0.0
        %1243 = vmatpush1.msra.mxu0 0.0
        %1244 = vmatprep.subr.mxu0 0.0
        %1245 = vmatpush1.msra.mxu0 0.0
        %1246 = vmatprep.subr.mxu0 0.0
        %1247 = vmatpush1.msra.mxu0 0.0
        %1248 = vmatprep.subr.mxu0 0.0
        %1249 = vmatpush1.msra.mxu0 0.0
        %1250 = vmatprep.subr.mxu0 0.0
        %1251 = vmatpush1.msra.mxu0 0.0
        %1252 = vmatprep.subr.mxu0 0.0
        %1253 = vmatpush1.msra.mxu0 0.0
        %1254 = vmatprep.subr.mxu0 0.0
        %1255 = vmatpush1.msra.mxu0 0.0
        %1256 = vmatprep.subr.mxu0 0.0
        %1257 = vmatpush1.msra.mxu0 0.0
        %1258 = vmatprep.subr.mxu0 0.0
        %1259 = vmatpush1.msra.mxu0 0.0
        %1260 = vmatprep.subr.mxu0 0.0
        %1261 = vmatpush1.msra.mxu0 0.0
        %1262 = vmatprep.mubr.f32.mxu0 0.0
        %1263 = vmatmul.mubr.f32.gmra.mrb[0].mxu0 %v1069
        %v1264 = vpop.f32.mrb[0].mxu0
        %v1265 = vadd.f32 0.0, %v1264
        %v1266 = vpop.f32.mrb[0].mxu0
        %v1267 = vadd.f32 0.0, %v1266
        %1268 = vmatprep.mubr.f32.mxu0 0.0
        %1269 = vmatmul.mubr.f32.gmra.mrb[0].mxu0 %v1071
        %v1270 = vpop.f32.mrb[0].mxu0
        %v1271 = vadd.f32 0.0, %v1270
        %v1272 = vpop.f32.mrb[0].mxu0
        %v1273 = vadd.f32 0.0, %v1272
        %1274 = vmatprep.mubr.f32.mxu0 0.0
        %1275 = vmatmul.mubr.f32.gmra.mrb[0].mxu0 %v1073
        %v1276 = vpop.f32.mrb[0].mxu0
        %v1277 = vadd.f32 0.0, %v1276
        %v1278 = vpop.f32.mrb[0].mxu0
        %v1279 = vadd.f32 0.0, %v1278
        %1280 = vmatprep.mubr.f32.mxu0 0.0
        %1281 = vmatmul.mubr.f32.gmra.mrb[0].mxu0 %v1075
        %v1282 = vpop.f32.mrb[0].mxu0
        %v1283 = vadd.f32 0.0, %v1282
        %v1284 = vpop.f32.mrb[0].mxu0
        %v1285 = vadd.f32 0.0, %v1284
        %1286 = vmatprep.mubr.f32.mxu0 0.0
        %1287 = vmatmul.mubr.f32.gmra.mrb[0].mxu0 %v1077
        %v1288 = vpop.f32.mrb[0].mxu0
        %v1289 = vadd.f32 0.0, %v1288
        %v1290 = vpop.f32.mrb[0].mxu0
        %v1291 = vadd.f32 0.0, %v1290
        %1292 = vmatprep.mubr.f32.mxu0 0.0
        %1293 = vmatmul.mubr.f32.gmra.mrb[0].mxu0 %v1079
        %v1294 = vpop.f32.mrb[0].mxu0
        %v1295 = vadd.f32 0.0, %v1294
        %v1296 = vpop.f32.mrb[0].mxu0
        %v1297 = vadd.f32 0.0, %v1296
        %1298 = vmatprep.mubr.f32.mxu0 0.0
        %1299 = vmatmul.mubr.f32.gmra.mrb[0].mxu0 %v1081
        %v1300 = vpop.f32.mrb[0].mxu0
        %v1301 = vadd.f32 0.0, %v1300
        %v1302 = vpop.f32.mrb[0].mxu0
        %v1303 = vadd.f32 0.0, %v1302
        %1304 = vmatprep.mubr.f32.mxu0 0.0
        %1305 = vmatmul.mubr.f32.gmra.mrb[0].mxu0 %v1083
        %v1306 = vpop.f32.mrb[0].mxu0
        %v1307 = vadd.f32 0.0, %v1306
        %v1308 = vpop.f32.mrb[0].mxu0
        %v1309 = vadd.f32 0.0, %v1308
        %1310 = vdwg.mxu0
        %v1311 = vadd.f32 %v1012, %v1152
        %v1312 = vadd.f32 %v1013, %v1154
        %v1313 = vadd.f32 %v1014, %v1265
        %v1314 = vadd.f32 %v1015, %v1267
        %v1315 = vadd.f32 %v1016, %v1158
        %v1316 = vadd.f32 %v1017, %v1160
        %v1317 = vadd.f32 %v1018, %v1271
        %v1318 = vadd.f32 %v1019, %v1273
        %v1319 = vadd.f32 %v1020, %v1164
        %v1320 = vadd.f32 %v1021, %v1166
        %v1321 = vadd.f32 %v1022, %v1277
        %v1322 = vadd.f32 %v1023, %v1279
        %v1323 = vadd.f32 %v1024, %v1170
        %v1324 = vadd.f32 %v1025, %v1172
        %v1325 = vadd.f32 %v1026, %v1283
        %v1326 = vadd.f32 %v1027, %v1285
        %v1327 = vadd.f32 %v1028, %v1176
        %v1328 = vadd.f32 %v1029, %v1178
        %v1329 = vadd.f32 %v1030, %v1289
        %v1330 = vadd.f32 %v1031, %v1291
        %v1331 = vadd.f32 %v1032, %v1182
        %v1332 = vadd.f32 %v1033, %v1184
        %v1333 = vadd.f32 %v1034, %v1295
        %v1334 = vadd.f32 %v1035, %v1297
        %v1335 = vadd.f32 %v1036, %v1188
        %v1336 = vadd.f32 %v1037, %v1190
        %v1337 = vadd.f32 %v1038, %v1301
        %v1338 = vadd.f32 %v1039, %v1303
        %v1339 = vadd.f32 %v1040, %v1194
        %v1340 = vadd.f32 %v1041, %v1196
        %v1341 = vadd.f32 %v1042, %v1307
        %v1342 = vadd.f32 %v1043, %v1309
        %s1343 = scalar_lea.vmem [#allocation2], 256
        %v1344 = vld [vmem:[%s1343] sm:$0xff]
        %v1345 = vld [vmem:[%s1343 + $0x8] sm:$0xff]
        %v1346 = vld [vmem:[%s1343 + $0x10] sm:$0xff]
        %v1347 = vld [vmem:[%s1343 + $0x18] sm:$0xff]
        %v1348 = vld [vmem:[%s1343 + $0x20] sm:$0xff]
        %v1349 = vld [vmem:[%s1343 + $0x28] sm:$0xff]
        %v1350 = vld [vmem:[%s1343 + $0x30] sm:$0xff]
        %v1351 = vld [vmem:[%s1343 + $0x38] sm:$0xff]
        %vm1352 = vcmask 1043456
        %v1353 = vrot.slane %v211, 4
        %v1354 = vrot.slane %v212, 4
        %v1355 = vsel %vm1352, %v1353, %v1354
        %v1356 = vrot.slane %v213, 4
        %v1357 = vsel %vm1352, %v1354, %v1356
        %v1358 = vrot.slane %v214, 4
        %v1359 = vsel %vm1352, %v1356, %v1358
        %v1360 = vrot.slane %v215, 4
        %v1361 = vsel %vm1352, %v1358, %v1360
        %v1362 = vrot.slane %v216, 4
        %v1363 = vsel %vm1352, %v1360, %v1362
        %v1364 = vrot.slane %v217, 4
        %v1365 = vsel %vm1352, %v1362, %v1364
        %v1366 = vrot.slane %v218, 4
        %v1367 = vsel %vm1352, %v1364, %v1366
        %v1368 = vsel %vm260, %v1355, 0
        %v1370 = vsel %vm260, %v1357, 0
        %v1372 = vsel %vm260, %v1359, 0
        %v1374 = vsel %vm260, %v1361, 0
        %v1376 = vsel %vm260, %v1363, 0
        %v1378 = vsel %vm260, %v1365, 0
        %v1380 = vsel %vm260, %v1367, 0
        %v1382 = vsel %vm260, %v1366, 0
        %1384 = vmatprep.subr.mxu0 %v1345
        %1385 = vmatpush1.msra.mxu0 %v1344
        %1386 = vmatprep.subr.mxu0 %v1349
        %1387 = vmatpush1.msra.mxu0 %v1348
        %1388 = vmatprep.subr.mxu0 0.0
        %1389 = vmatpush1.msra.mxu0 0.0
        %1390 = vmatprep.subr.mxu0 0.0
        %1391 = vmatpush1.msra.mxu0 0.0
        %1392 = vmatprep.subr.mxu0 0.0
        %1393 = vmatpush1.msra.mxu0 0.0
        %1394 = vmatprep.subr.mxu0 0.0
        %1395 = vmatpush1.msra.mxu0 0.0
        %1396 = vmatprep.subr.mxu0 0.0
        %1397 = vmatpush1.msra.mxu0 0.0
        %1398 = vmatprep.subr.mxu0 0.0
        %1399 = vmatpush1.msra.mxu0 0.0
        %1400 = vmatprep.subr.mxu0 0.0
        %1401 = vmatpush1.msra.mxu0 0.0
        %1402 = vmatprep.subr.mxu0 0.0
        %1403 = vmatpush1.msra.mxu0 0.0
        %1404 = vmatprep.subr.mxu0 0.0
        %1405 = vmatpush1.msra.mxu0 0.0
        %1406 = vmatprep.subr.mxu0 0.0
        %1407 = vmatpush1.msra.mxu0 0.0
        %1408 = vmatprep.subr.mxu0 0.0
        %1409 = vmatpush1.msra.mxu0 0.0
        %1410 = vmatprep.subr.mxu0 0.0
        %1411 = vmatpush1.msra.mxu0 0.0
        %1412 = vmatprep.subr.mxu0 0.0
        %1413 = vmatpush1.msra.mxu0 0.0
        %1414 = vmatprep.subr.mxu0 0.0
        %1415 = vmatpush1.msra.mxu0 0.0
        %1416 = vmatprep.subr.mxu0 0.0
        %1417 = vmatpush1.msra.mxu0 0.0
        %1418 = vmatprep.subr.mxu0 0.0
        %1419 = vmatpush1.msra.mxu0 0.0
        %1420 = vmatprep.subr.mxu0 0.0
        %1421 = vmatpush1.msra.mxu0 0.0
        %1422 = vmatprep.subr.mxu0 0.0
        %1423 = vmatpush1.msra.mxu0 0.0
        %1424 = vmatprep.subr.mxu0 0.0
        %1425 = vmatpush1.msra.mxu0 0.0
        %1426 = vmatprep.subr.mxu0 0.0
        %1427 = vmatpush1.msra.mxu0 0.0
        %1428 = vmatprep.subr.mxu0 0.0
        %1429 = vmatpush1.msra.mxu0 0.0
        %1430 = vmatprep.subr.mxu0 0.0
        %1431 = vmatpush1.msra.mxu0 0.0
        %1432 = vmatprep.subr.mxu0 0.0
        %1433 = vmatpush1.msra.mxu0 0.0
        %1434 = vmatprep.subr.mxu0 0.0
        %1435 = vmatpush1.msra.mxu0 0.0
        %1436 = vmatprep.subr.mxu0 0.0
        %1437 = vmatpush1.msra.mxu0 0.0
        %1438 = vmatprep.subr.mxu0 0.0
        %1439 = vmatpush1.msra.mxu0 0.0
        %1440 = vmatprep.subr.mxu0 0.0
        %1441 = vmatpush1.msra.mxu0 0.0
        %1442 = vmatprep.subr.mxu0 0.0
        %1443 = vmatpush1.msra.mxu0 0.0
        %1444 = vmatprep.subr.mxu0 0.0
        %1445 = vmatpush1.msra.mxu0 0.0
        %1446 = vmatprep.subr.mxu0 0.0
        %1447 = vmatpush1.msra.mxu0 0.0
        %1448 = vmatprep.mubr.f32.mxu0 0.0
        %1449 = vmatmul.mubr.f32.gmra.mrb[0].mxu0 %v1368
        %v1450 = vpop.f32.mrb[0].mxu0
        %v1451 = vadd.f32 0.0, %v1450
        %v1452 = vpop.f32.mrb[0].mxu0
        %v1453 = vadd.f32 0.0, %v1452
        %1454 = vmatprep.mubr.f32.mxu0 0.0
        %1455 = vmatmul.mubr.f32.gmra.mrb[0].mxu0 %v1370
        %v1456 = vpop.f32.mrb[0].mxu0
        %v1457 = vadd.f32 0.0, %v1456
        %v1458 = vpop.f32.mrb[0].mxu0
        %v1459 = vadd.f32 0.0, %v1458
        %1460 = vmatprep.mubr.f32.mxu0 0.0
        %1461 = vmatmul.mubr.f32.gmra.mrb[0].mxu0 %v1372
        %v1462 = vpop.f32.mrb[0].mxu0
        %v1463 = vadd.f32 0.0, %v1462
        %v1464 = vpop.f32.mrb[0].mxu0
        %v1465 = vadd.f32 0.0, %v1464
        %1466 = vmatprep.mubr.f32.mxu0 0.0
        %1467 = vmatmul.mubr.f32.gmra.mrb[0].mxu0 %v1374
        %v1468 = vpop.f32.mrb[0].mxu0
        %v1469 = vadd.f32 0.0, %v1468
        %v1470 = vpop.f32.mrb[0].mxu0
        %v1471 = vadd.f32 0.0, %v1470
        %1472 = vmatprep.mubr.f32.mxu0 0.0
        %1473 = vmatmul.mubr.f32.gmra.mrb[0].mxu0 %v1376
        %v1474 = vpop.f32.mrb[0].mxu0
        %v1475 = vadd.f32 0.0, %v1474
        %v1476 = vpop.f32.mrb[0].mxu0
        %v1477 = vadd.f32 0.0, %v1476
        %1478 = vmatprep.mubr.f32.mxu0 0.0
        %1479 = vmatmul.mubr.f32.gmra.mrb[0].mxu0 %v1378
        %v1480 = vpop.f32.mrb[0].mxu0
        %v1481 = vadd.f32 0.0, %v1480
        %v1482 = vpop.f32.mrb[0].mxu0
        %v1483 = vadd.f32 0.0, %v1482
        %1484 = vmatprep.mubr.f32.mxu0 0.0
        %1485 = vmatmul.mubr.f32.gmra.mrb[0].mxu0 %v1380
        %v1486 = vpop.f32.mrb[0].mxu0
        %v1487 = vadd.f32 0.0, %v1486
        %v1488 = vpop.f32.mrb[0].mxu0
        %v1489 = vadd.f32 0.0, %v1488
        %1490 = vmatprep.mubr.f32.mxu0 0.0
        %1491 = vmatmul.mubr.f32.gmra.mrb[0].mxu0 %v1382
        %v1492 = vpop.f32.mrb[0].mxu0
        %v1493 = vadd.f32 0.0, %v1492
        %v1494 = vpop.f32.mrb[0].mxu0
        %v1495 = vadd.f32 0.0, %v1494
        %1496 = vdwg.mxu0
        %1497 = vmatprep.subr.mxu0 %v1347
        %1498 = vmatpush1.msra.mxu0 %v1346
        %1499 = vmatprep.subr.mxu0 %v1351
        %1500 = vmatpush1.msra.mxu0 %v1350
        %1501 = vmatprep.subr.mxu0 0.0
        %1502 = vmatpush1.msra.mxu0 0.0
        %1503 = vmatprep.subr.mxu0 0.0
        %1504 = vmatpush1.msra.mxu0 0.0
        %1505 = vmatprep.subr.mxu0 0.0
        %1506 = vmatpush1.msra.mxu0 0.0
        %1507 = vmatprep.subr.mxu0 0.0
        %1508 = vmatpush1.msra.mxu0 0.0
        %1509 = vmatprep.subr.mxu0 0.0
        %1510 = vmatpush1.msra.mxu0 0.0
        %1511 = vmatprep.subr.mxu0 0.0
        %1512 = vmatpush1.msra.mxu0 0.0
        %1513 = vmatprep.subr.mxu0 0.0
        %1514 = vmatpush1.msra.mxu0 0.0
        %1515 = vmatprep.subr.mxu0 0.0
        %1516 = vmatpush1.msra.mxu0 0.0
        %1517 = vmatprep.subr.mxu0 0.0
        %1518 = vmatpush1.msra.mxu0 0.0
        %1519 = vmatprep.subr.mxu0 0.0
        %1520 = vmatpush1.msra.mxu0 0.0
        %1521 = vmatprep.subr.mxu0 0.0
        %1522 = vmatpush1.msra.mxu0 0.0
        %1523 = vmatprep.subr.mxu0 0.0
        %1524 = vmatpush1.msra.mxu0 0.0
        %1525 = vmatprep.subr.mxu0 0.0
        %1526 = vmatpush1.msra.mxu0 0.0
        %1527 = vmatprep.subr.mxu0 0.0
        %1528 = vmatpush1.msra.mxu0 0.0
        %1529 = vmatprep.subr.mxu0 0.0
        %1530 = vmatpush1.msra.mxu0 0.0
        %1531 = vmatprep.subr.mxu0 0.0
        %1532 = vmatpush1.msra.mxu0 0.0
        %1533 = vmatprep.subr.mxu0 0.0
        %1534 = vmatpush1.msra.mxu0 0.0
        %1535 = vmatprep.subr.mxu0 0.0
        %1536 = vmatpush1.msra.mxu0 0.0
        %1537 = vmatprep.subr.mxu0 0.0
        %1538 = vmatpush1.msra.mxu0 0.0
        %1539 = vmatprep.subr.mxu0 0.0
        %1540 = vmatpush1.msra.mxu0 0.0
        %1541 = vmatprep.subr.mxu0 0.0
        %1542 = vmatpush1.msra.mxu0 0.0
        %1543 = vmatprep.subr.mxu0 0.0
        %1544 = vmatpush1.msra.mxu0 0.0
        %1545 = vmatprep.subr.mxu0 0.0
        %1546 = vmatpush1.msra.mxu0 0.0
        %1547 = vmatprep.subr.mxu0 0.0
        %1548 = vmatpush1.msra.mxu0 0.0
        %1549 = vmatprep.subr.mxu0 0.0
        %1550 = vmatpush1.msra.mxu0 0.0
        %1551 = vmatprep.subr.mxu0 0.0
        %1552 = vmatpush1.msra.mxu0 0.0
        %1553 = vmatprep.subr.mxu0 0.0
        %1554 = vmatpush1.msra.mxu0 0.0
        %1555 = vmatprep.subr.mxu0 0.0
        %1556 = vmatpush1.msra.mxu0 0.0
        %1557 = vmatprep.subr.mxu0 0.0
        %1558 = vmatpush1.msra.mxu0 0.0
        %1559 = vmatprep.subr.mxu0 0.0
        %1560 = vmatpush1.msra.mxu0 0.0
        %1561 = vmatprep.mubr.f32.mxu0 0.0
        %1562 = vmatmul.mubr.f32.gmra.mrb[0].mxu0 %v1368
        %v1563 = vpop.f32.mrb[0].mxu0
        %v1564 = vadd.f32 0.0, %v1563
        %v1565 = vpop.f32.mrb[0].mxu0
        %v1566 = vadd.f32 0.0, %v1565
        %1567 = vmatprep.mubr.f32.mxu0 0.0
        %1568 = vmatmul.mubr.f32.gmra.mrb[0].mxu0 %v1370
        %v1569 = vpop.f32.mrb[0].mxu0
        %v1570 = vadd.f32 0.0, %v1569
        %v1571 = vpop.f32.mrb[0].mxu0
        %v1572 = vadd.f32 0.0, %v1571
        %1573 = vmatprep.mubr.f32.mxu0 0.0
        %1574 = vmatmul.mubr.f32.gmra.mrb[0].mxu0 %v1372
        %v1575 = vpop.f32.mrb[0].mxu0
        %v1576 = vadd.f32 0.0, %v1575
        %v1577 = vpop.f32.mrb[0].mxu0
        %v1578 = vadd.f32 0.0, %v1577
        %1579 = vmatprep.mubr.f32.mxu0 0.0
        %1580 = vmatmul.mubr.f32.gmra.mrb[0].mxu0 %v1374
        %v1581 = vpop.f32.mrb[0].mxu0
        %v1582 = vadd.f32 0.0, %v1581
        %v1583 = vpop.f32.mrb[0].mxu0
        %v1584 = vadd.f32 0.0, %v1583
        %1585 = vmatprep.mubr.f32.mxu0 0.0
        %1586 = vmatmul.mubr.f32.gmra.mrb[0].mxu0 %v1376
        %v1587 = vpop.f32.mrb[0].mxu0
        %v1588 = vadd.f32 0.0, %v1587
        %v1589 = vpop.f32.mrb[0].mxu0
        %v1590 = vadd.f32 0.0, %v1589
        %1591 = vmatprep.mubr.f32.mxu0 0.0
        %1592 = vmatmul.mubr.f32.gmra.mrb[0].mxu0 %v1378
        %v1593 = vpop.f32.mrb[0].mxu0
        %v1594 = vadd.f32 0.0, %v1593
        %v1595 = vpop.f32.mrb[0].mxu0
        %v1596 = vadd.f32 0.0, %v1595
        %1597 = vmatprep.mubr.f32.mxu0 0.0
        %1598 = vmatmul.mubr.f32.gmra.mrb[0].mxu0 %v1380
        %v1599 = vpop.f32.mrb[0].mxu0
        %v1600 = vadd.f32 0.0, %v1599
        %v1601 = vpop.f32.mrb[0].mxu0
        %v1602 = vadd.f32 0.0, %v1601
        %1603 = vmatprep.mubr.f32.mxu0 0.0
        %1604 = vmatmul.mubr.f32.gmra.mrb[0].mxu0 %v1382
        %v1605 = vpop.f32.mrb[0].mxu0
        %v1606 = vadd.f32 0.0, %v1605
        %v1607 = vpop.f32.mrb[0].mxu0
        %v1608 = vadd.f32 0.0, %v1607
        %1609 = vdwg.mxu0
        %v1610 = vadd.f32 %v1311, %v1451
        %v1611 = vadd.f32 %v1312, %v1453
        %v1612 = vadd.f32 %v1313, %v1564
        %v1613 = vadd.f32 %v1314, %v1566
        %v1614 = vadd.f32 %v1315, %v1457
        %v1615 = vadd.f32 %v1316, %v1459
        %v1616 = vadd.f32 %v1317, %v1570
        %v1617 = vadd.f32 %v1318, %v1572
        %v1618 = vadd.f32 %v1319, %v1463
        %v1619 = vadd.f32 %v1320, %v1465
        %v1620 = vadd.f32 %v1321, %v1576
        %v1621 = vadd.f32 %v1322, %v1578
        %v1622 = vadd.f32 %v1323, %v1469
        %v1623 = vadd.f32 %v1324, %v1471
        %v1624 = vadd.f32 %v1325, %v1582
        %v1625 = vadd.f32 %v1326, %v1584
        %v1626 = vadd.f32 %v1327, %v1475
        %v1627 = vadd.f32 %v1328, %v1477
        %v1628 = vadd.f32 %v1329, %v1588
        %v1629 = vadd.f32 %v1330, %v1590
        %v1630 = vadd.f32 %v1331, %v1481
        %v1631 = vadd.f32 %v1332, %v1483
        %v1632 = vadd.f32 %v1333, %v1594
        %v1633 = vadd.f32 %v1334, %v1596
        %v1634 = vadd.f32 %v1335, %v1487
        %v1635 = vadd.f32 %v1336, %v1489
        %v1636 = vadd.f32 %v1337, %v1600
        %v1637 = vadd.f32 %v1338, %v1602
        %v1638 = vadd.f32 %v1339, %v1493
        %v1639 = vadd.f32 %v1340, %v1495
        %v1640 = vadd.f32 %v1341, %v1606
        %v1641 = vadd.f32 %v1342, %v1608
        %v1642 = vmax.f32 %v1610, %v1612
        %v1643 = vmax.f32 %v1611, %v1613
        %v1644 = vmax.f32 %v1614, %v1616
        %v1645 = vmax.f32 %v1615, %v1617
        %v1646 = vmax.f32 %v1618, %v1620
        %v1647 = vmax.f32 %v1619, %v1621
        %v1648 = vmax.f32 %v1622, %v1624
        %v1649 = vmax.f32 %v1623, %v1625
        %v1650 = vmax.f32 %v1626, %v1628
        %v1651 = vmax.f32 %v1627, %v1629
        %v1652 = vmax.f32 %v1630, %v1632
        %v1653 = vmax.f32 %v1631, %v1633
        %v1654 = vmax.f32 %v1634, %v1636
        %v1655 = vmax.f32 %v1635, %v1637
        %v1656 = vmax.f32 %v1638, %v1640
        %v1657 = vmax.f32 %v1639, %v1641
        %v1658 = vld [vmem:[%s2] sm:$0xff]
        %v1659 = vld [vmem:[%s2 + $0x8] sm:$0xff]
        %v1660 = vld [vmem:[%s2 + $0x10] sm:$0xff]
        %vm1661 = vcmask 490496
        %v1663 = vsel %vm1661, %v1658, 0
        %v1666 = vsel %vm1661, %v1659, 0
        %v1669 = vsel %vm1661, %v1660, 0
        %v1672 = vsel %vm1352, %v1656, 0
        %v1675 = vsel %vm1352, %v1657, 0
        %1677 = vmatprep.subr.mxu0 %v1643
        %1678 = vmatpush1.msra.mxu0 %v1642
        %1679 = vmatprep.subr.mxu0 %v1645
        %1680 = vmatpush1.msra.mxu0 %v1644
        %1681 = vmatprep.subr.mxu0 %v1647
        %1682 = vmatpush1.msra.mxu0 %v1646
        %1683 = vmatprep.subr.mxu0 %v1649
        %1684 = vmatpush1.msra.mxu0 %v1648
        %1685 = vmatprep.subr.mxu0 %v1651
        %1686 = vmatpush1.msra.mxu0 %v1650
        %1687 = vmatprep.subr.mxu0 %v1653
        %1688 = vmatpush1.msra.mxu0 %v1652
        %1689 = vmatprep.subr.mxu0 %v1655
        %1690 = vmatpush1.msra.mxu0 %v1654
        %1691 = vmatprep.subr.mxu0 %v1675
        %1692 = vmatpush1.msra.mxu0 %v1672
        %1693 = vmatprep.subr.mxu0 0.0
        %1694 = vmatpush1.msra.mxu0 0.0
        %1695 = vmatprep.subr.mxu0 0.0
        %1696 = vmatpush1.msra.mxu0 0.0
        %1697 = vmatprep.subr.mxu0 0.0
        %1698 = vmatpush1.msra.mxu0 0.0
        %1699 = vmatprep.subr.mxu0 0.0
        %1700 = vmatpush1.msra.mxu0 0.0
        %1701 = vmatprep.subr.mxu0 0.0
        %1702 = vmatpush1.msra.mxu0 0.0
        %1703 = vmatprep.subr.mxu0 0.0
        %1704 = vmatpush1.msra.mxu0 0.0
        %1705 = vmatprep.subr.mxu0 0.0
        %1706 = vmatpush1.msra.mxu0 0.0
        %1707 = vmatprep.subr.mxu0 0.0
        %1708 = vmatpush1.msra.mxu0 0.0
        %1709 = vmatprep.subr.mxu0 0.0
        %1710 = vmatpush1.msra.mxu0 0.0
        %1711 = vmatprep.subr.mxu0 0.0
        %1712 = vmatpush1.msra.mxu0 0.0
        %1713 = vmatprep.subr.mxu0 0.0
        %1714 = vmatpush1.msra.mxu0 0.0
        %1715 = vmatprep.subr.mxu0 0.0
        %1716 = vmatpush1.msra.mxu0 0.0
        %1717 = vmatprep.subr.mxu0 0.0
        %1718 = vmatpush1.msra.mxu0 0.0
        %1719 = vmatprep.subr.mxu0 0.0
        %1720 = vmatpush1.msra.mxu0 0.0
        %1721 = vmatprep.subr.mxu0 0.0
        %1722 = vmatpush1.msra.mxu0 0.0
        %1723 = vmatprep.subr.mxu0 0.0
        %1724 = vmatpush1.msra.mxu0 0.0
        %1725 = vmatprep.subr.mxu0 0.0
        %1726 = vmatpush1.msra.mxu0 0.0
        %1727 = vmatprep.subr.mxu0 0.0
        %1728 = vmatpush1.msra.mxu0 0.0
        %1729 = vmatprep.subr.mxu0 0.0
        %1730 = vmatpush1.msra.mxu0 0.0
        %1731 = vmatprep.subr.mxu0 0.0
        %1732 = vmatpush1.msra.mxu0 0.0
        %1733 = vmatprep.subr.mxu0 0.0
        %1734 = vmatpush1.msra.mxu0 0.0
        %1735 = vmatprep.subr.mxu0 0.0
        %1736 = vmatpush1.msra.mxu0 0.0
        %1737 = vmatprep.subr.mxu0 0.0
        %1738 = vmatpush1.msra.mxu0 0.0
        %1739 = vmatprep.subr.mxu0 0.0
        %1740 = vmatpush1.msra.mxu0 0.0
        %1741 = vmatprep.mubr.f32.mxu0 0.0
        %1742 = vmatmul.mubr.f32.gmra.mrb[0].mxu0 %v1663
        %v1743 = vpop.f32.mrb[0].mxu0
        %v1744 = vadd.f32 0.0, %v1743
        %v1745 = vpop.f32.mrb[0].mxu0
        %v1746 = vadd.f32 0.0, %v1745
        %1747 = vmatprep.mubr.f32.mxu0 0.0
        %1748 = vmatmul.mubr.f32.gmra.mrb[0].mxu0 %v1666
        %v1749 = vpop.f32.mrb[0].mxu0
        %v1750 = vadd.f32 0.0, %v1749
        %v1751 = vpop.f32.mrb[0].mxu0
        %v1752 = vadd.f32 0.0, %v1751
        %1753 = vmatprep.mubr.f32.mxu0 0.0
        %1754 = vmatmul.mubr.f32.gmra.mrb[0].mxu0 %v1669
        %v1755 = vpop.f32.mrb[0].mxu0
        %v1756 = vadd.f32 0.0, %v1755
        %v1757 = vpop.f32.mrb[0].mxu0
        %v1758 = vadd.f32 0.0, %v1757
        %1759 = vdwg.mxu0
        %s1760 = scalar_lea.vmem %s2, 24
        %v1761 = vld [vmem:[%s1760] sm:$0xff]
        %v1762 = vld [vmem:[%s1760 + $0x8] sm:$0xff]
        %v1763 = vld [vmem:[%s1760 + $0x10] sm:$0xff]
        %v1765 = vsel %vm1661, %v1761, 0
        %v1768 = vsel %vm1661, %v1762, 0
        %v1771 = vsel %vm1661, %v1763, 0
        %1773 = vmatprep.subr.mxu0 %v1643
        %1774 = vmatpush1.msra.mxu0 %v1642
        %1775 = vmatprep.subr.mxu0 %v1645
        %1776 = vmatpush1.msra.mxu0 %v1644
        %1777 = vmatprep.subr.mxu0 %v1647
        %1778 = vmatpush1.msra.mxu0 %v1646
        %1779 = vmatprep.subr.mxu0 %v1649
        %1780 = vmatpush1.msra.mxu0 %v1648
        %1781 = vmatprep.subr.mxu0 %v1651
        %1782 = vmatpush1.msra.mxu0 %v1650
        %1783 = vmatprep.subr.mxu0 %v1653
        %1784 = vmatpush1.msra.mxu0 %v1652
        %1785 = vmatprep.subr.mxu0 %v1655
        %1786 = vmatpush1.msra.mxu0 %v1654
        %1787 = vmatprep.subr.mxu0 %v1675
        %1788 = vmatpush1.msra.mxu0 %v1672
        %1789 = vmatprep.subr.mxu0 0.0
        %1790 = vmatpush1.msra.mxu0 0.0
        %1791 = vmatprep.subr.mxu0 0.0
        %1792 = vmatpush1.msra.mxu0 0.0
        %1793 = vmatprep.subr.mxu0 0.0
        %1794 = vmatpush1.msra.mxu0 0.0
        %1795 = vmatprep.subr.mxu0 0.0
        %1796 = vmatpush1.msra.mxu0 0.0
        %1797 = vmatprep.subr.mxu0 0.0
        %1798 = vmatpush1.msra.mxu0 0.0
        %1799 = vmatprep.subr.mxu0 0.0
        %1800 = vmatpush1.msra.mxu0 0.0
        %1801 = vmatprep.subr.mxu0 0.0
        %1802 = vmatpush1.msra.mxu0 0.0
        %1803 = vmatprep.subr.mxu0 0.0
        %1804 = vmatpush1.msra.mxu0 0.0
        %1805 = vmatprep.subr.mxu0 0.0
        %1806 = vmatpush1.msra.mxu0 0.0
        %1807 = vmatprep.subr.mxu0 0.0
        %1808 = vmatpush1.msra.mxu0 0.0
        %1809 = vmatprep.subr.mxu0 0.0
        %1810 = vmatpush1.msra.mxu0 0.0
        %1811 = vmatprep.subr.mxu0 0.0
        %1812 = vmatpush1.msra.mxu0 0.0
        %1813 = vmatprep.subr.mxu0 0.0
        %1814 = vmatpush1.msra.mxu0 0.0
        %1815 = vmatprep.subr.mxu0 0.0
        %1816 = vmatpush1.msra.mxu0 0.0
        %1817 = vmatprep.subr.mxu0 0.0
        %1818 = vmatpush1.msra.mxu0 0.0
        %1819 = vmatprep.subr.mxu0 0.0
        %1820 = vmatpush1.msra.mxu0 0.0
        %1821 = vmatprep.subr.mxu0 0.0
        %1822 = vmatpush1.msra.mxu0 0.0
        %1823 = vmatprep.subr.mxu0 0.0
        %1824 = vmatpush1.msra.mxu0 0.0
        %1825 = vmatprep.subr.mxu0 0.0
        %1826 = vmatpush1.msra.mxu0 0.0
        %1827 = vmatprep.subr.mxu0 0.0
        %1828 = vmatpush1.msra.mxu0 0.0
        %1829 = vmatprep.subr.mxu0 0.0
        %1830 = vmatpush1.msra.mxu0 0.0
        %1831 = vmatprep.subr.mxu0 0.0
        %1832 = vmatpush1.msra.mxu0 0.0
        %1833 = vmatprep.subr.mxu0 0.0
        %1834 = vmatpush1.msra.mxu0 0.0
        %1835 = vmatprep.subr.mxu0 0.0
        %1836 = vmatpush1.msra.mxu0 0.0
        %1837 = vmatprep.mubr.f32.mxu0 0.0
        %1838 = vmatmul.mubr.f32.gmra.mrb[0].mxu0 %v1765
        %v1839 = vpop.f32.mrb[0].mxu0
        %v1840 = vadd.f32 0.0, %v1839
        %v1841 = vpop.f32.mrb[0].mxu0
        %v1842 = vadd.f32 0.0, %v1841
        %1843 = vmatprep.mubr.f32.mxu0 0.0
        %1844 = vmatmul.mubr.f32.gmra.mrb[0].mxu0 %v1768
        %v1845 = vpop.f32.mrb[0].mxu0
        %v1846 = vadd.f32 0.0, %v1845
        %v1847 = vpop.f32.mrb[0].mxu0
        %v1848 = vadd.f32 0.0, %v1847
        %1849 = vmatprep.mubr.f32.mxu0 0.0
        %1850 = vmatmul.mubr.f32.gmra.mrb[0].mxu0 %v1771
        %v1851 = vpop.f32.mrb[0].mxu0
        %v1852 = vadd.f32 0.0, %v1851
        %v1853 = vpop.f32.mrb[0].mxu0
        %v1854 = vadd.f32 0.0, %v1853
        %1855 = vdwg.mxu0
        %v1856 = vmax.f32 %v1744, %v1840
        %v1857 = vmax.f32 %v1746, %v1842
        %v1858 = vmax.f32 %v1750, %v1846
        %v1859 = vmax.f32 %v1752, %v1848
        %v1860 = vmax.f32 %v1756, %v1852
        %v1861 = vmax.f32 %v1758, %v1854
        %v1862 = vld [vmem:[%s3] sm:$0x3]
        %v1864 = vlaneseq
        %v1865 = vshrl.u32 %v1864, 7
        %v1866 = vsub.s32 0, %v1865
        %v1867 = vrot.slane %v1862, %v1866
        %v1868 = vlaneseq
        %v1869 = vshrl.u32 %v1868, 7
        %v1870 = vsub.s32 1, %v1869
        %v1871 = vrot.slane %v1862, %v1870
        %v1874 = vadd.f32 %v1856, %v1867
        %v1875 = vadd.f32 %v1857, %v1871
        %v1876 = vadd.f32 %v1858, %v1867
        %v1877 = vadd.f32 %v1859, %v1871
        %v1878 = vadd.f32 %v1860, %v1867
        %v1879 = vadd.f32 %v1861, %v1871
        %v1880 = vmax.f32 %v1874, 0.0
        %v1881 = vmax.f32 %v1875, 0.0
        %v1882 = vmax.f32 %v1876, 0.0
        %v1883 = vmax.f32 %v1877, 0.0
        %v1884 = vmax.f32 %v1878, 0.0
        %v1885 = vmax.f32 %v1879, 0.0
        %1886 = vst [vmem:[%s205] sm:$0xff] %v1880
        %1887 = vst [vmem:[%s205 + $0x8] sm:$0xff] %v1881
        %1888 = vst [vmem:[%s205 + $0x10] sm:$0xff] %v1882
        %1889 = vst [vmem:[%s205 + $0x18] sm:$0xff] %v1883
        %1890 = vst [vmem:[%s205 + $0x20] sm:$0xff] %v1884
        %1891 = vst [vmem:[%s205 + $0x28] sm:$0xff] %v1885
        %s1892 = sand.u32 %s116, 1
        %s1893 = scalar_lea.sflag [#allocation4], %s1892
        %s1894 = sand.u32 %s116, 1
        %s1895 = smul.addr %s1894, 48
        %s1896 = scalar_lea.vmem [#allocation5], %s1895
        // Predicated region
        $region41: #{tpu_custom_call.1} parent=35 // pred_check
          %p1897 = pneg %p126
        $region42: #{tpu_custom_call.1} parent=35 // pred_check_branch
          %1899 = sbr.rel (%p1897) target = $region44
        $region43: #{tpu_custom_call.1} parent=35 // pred_region
          %s1901 = ssub.s32 768, 768
          %1902 = vsyncadd %s1893, %s1901
          %s1903 = smul.addr %s19, 6
          %s1904 = smul.addr %s1903, 128
          %s1905 = scalar_lea.hbm %s4, %s1904
          %s1906 = sshll.u32 %s1896, 4
          %s1907 = int_to_ptr.vmem [resolvable:$true] %s1906
          %1912 = dma.vmem_to_hbm [thread:$0]  %s1907, 768, %s1905, %s1893, 256, 256, 16
        $region44: #{tpu_custom_call.1} parent=35 // pred_fallthru
          _
      $region36: #{tpu_custom_call.1} parent=5 // pred_fallthru
        _
      %p1913 = scmp.le.s32.totalorder 2, %s14
      // Predicated region
      $region45: #{tpu_custom_call.1} parent=5 // pred_check
        %p1914 = pneg %p1913
      $region46: #{tpu_custom_call.1} parent=5 // pred_check_branch
        %1916 = sbr.rel (%p1914) target = $region48
      $region47: #{tpu_custom_call.1} parent=5 // pred_region
        %s1917 = ssub.s32 %s14, 2
        // Predicated region
        $region49: #{tpu_custom_call.1} parent=47 // pred_check
          %p1918 = pneg %p132
        $region50: #{tpu_custom_call.1} parent=47 // pred_check_branch
          %1920 = sbr.rel (%p1918) target = $region52
        $region51: #{tpu_custom_call.1} parent=47 // pred_region
          %s1921 = sand.u32 %s117, 1
          %s1922 = scalar_lea.sflag [#allocation4], %s1921
          %s1923 = sand.u32 %s117, 1
          %s1924 = smul.addr %s1923, 48
          %s1925 = scalar_lea.vmem [#allocation5], %s1924
          %1926 = dma.done %s1922, 768
        $region52: #{tpu_custom_call.1} parent=47 // pred_fallthru
          _
      $region48: #{tpu_custom_call.1} parent=5 // pred_fallthru
        _
    $region6: #{tpu_custom_call.1} parent=1 // loop_footer
      %s18 = sadd.s32 1, %s14
    $region7: #{tpu_custom_call.1} parent=1 // loop_footer_branch
      %13 = sbr.rel target = $region3
    $region8: #{tpu_custom_call.1} parent=1 // loop_exit
      _
    %1927 = vsyncpa [#allocation3], 1
    %s1928 = scalar_lea.sflag [#allocation3], 1
    %1929 = vsyncpa %s1928, 1
    %1930 = vsyncpa [#allocation4], 1
    %s1931 = scalar_lea.sflag [#allocation4], 1
    %1932 = vsyncpa %s1931, 1

</llo_original>
